<compile_context>
chip_gen: v7x
topology: tpu7x:2x2x1
jax: 0.10.0
libtpu: 0.0.40
codegen_flags: <defaults>
</compile_context>

<pallas_src>
import functools
from math import sqrt

import jax
import jax.numpy as jnp
from jax.experimental import pallas as pl
from jax.experimental.pallas import tpu as pltpu


# ----------------------------- Pallas kernel ------------------------------- #

def mha_kernel(x_ref, wqkv_ref, wot_ref, bqkv_ref, bo_ref, out_ref,
               *, num_heads, head_dim, compute_dtype):
    """One batch-block grid step of multi-head self-attention.

    x_ref    : (Bblk, T, E)   query rows for this batch block (compute dtype)
    wqkv_ref : (E, 3E)        fused, transposed [Wq|Wk|Wv]; Wq columns pre-scaled
    wot_ref  : (E, E)         transposed out-projection weight
    bqkv_ref : (1, 3E)        fused [bq|bk|bv] bias (bq pre-scaled), f32
    bo_ref   : (1, E)         out-projection bias, f32
    out_ref  : (Bblk, T, E)   output block (f32)
    """
    Bblk, T, E = x_ref.shape
    R = Bblk * T

    # Pack all rows of the block into one lane-dense (R, E) slab.
    x = x_ref[...].reshape(R, E)
    if x.dtype != compute_dtype:
        x = x.astype(compute_dtype)

    # Fused Q/K/V projection: a single (R,E)x(E,3E) MXU matmul, f32 accumulate.
    # 1/sqrt(head_dim) scaling is already folded into the Q columns / bq.
    qkv = jnp.dot(x, wqkv_ref[...], preferred_element_type=jnp.float32) + bqkv_ref[...]
    qkv = qkv.reshape(Bblk, T, 3 * E)

    approx = compute_dtype != jnp.float32
    head_outs = []
    for h in range(num_heads):  # static unroll; HD-deep contraction is inherent to MHA
        lo = h * head_dim
        qh = qkv[:, :, lo:lo + head_dim].astype(compute_dtype)
        kh = qkv[:, :, E + lo:E + lo + head_dim].astype(compute_dtype)
        vh = qkv[:, :, 2 * E + lo:2 * E + lo + head_dim].astype(compute_dtype)

        # Batched (over the packed batch block) score matmul, f32 accumulate.
        scores = jnp.einsum("bqd,bkd->bqk", qh, kh,
                            preferred_element_type=jnp.float32)

        # Numerically-stable softmax, entirely in f32.
        m = jnp.max(scores, axis=-1, keepdims=True)
        e = jnp.exp(scores - m)
        denom = jnp.sum(e, axis=-1, keepdims=True)
        probs = e * pl.reciprocal(denom, approx=approx)

        head_outs.append(
            jnp.einsum("bqk,bkd->bqd", probs.astype(compute_dtype), vh,
                       preferred_element_type=jnp.float32))

    # Re-assemble heads along the embed (lane) axis, then one lane-dense
    # (R,E)x(E,E) out-projection matmul for the whole block.
    attn = jnp.concatenate(head_outs, axis=-1).reshape(R, E)
    out = jnp.dot(attn.astype(compute_dtype), wot_ref[...],
                  preferred_element_type=jnp.float32) + bo_ref[...]
    out_ref[...] = out.reshape(Bblk, T, E).astype(out_ref.dtype)

    # TODO(synk): key_padding_mask / attn_mask / dropout / add_bias_kv /
    # add_zero_attn / need_weights branches of the PyTorch forward are not
    # exercised with default arguments and are not implemented.


# ------------------------------ JAX wrapper -------------------------------- #

def prepare_kernel_params(params, num_heads, compute_dtype=jnp.float32):
    """One-time parameter prep: transpose, fuse QKV, fold scaling into Wq/bq."""
    E = params["q_w"].shape[0]
    head_dim = E // num_heads
    scaling = float(head_dim) ** -0.5
    wq_t = (params["q_w"] * scaling).T          # (E_in, E_out), pre-scaled
    wk_t = params["k_w"].T
    wv_t = params["v_w"].T
    wqkv = jnp.concatenate([wq_t, wk_t, wv_t], axis=1).astype(compute_dtype)  # (E, 3E)
    bqkv = jnp.concatenate(
        [params["q_b"] * scaling, params["k_b"], params["v_b"]]
    ).reshape(1, 3 * E).astype(jnp.float32)
    return {
        "wqkv": wqkv,
        "wot": params["o_w"].T.astype(compute_dtype),
        "bqkv": bqkv,
        "bo": params["o_b"].reshape(1, E).astype(jnp.float32),
    }


def _batch_block(B, T, target_rows=256, min_steps=2):
    """Pick Bblk | B so Bblk*T ~<= target_rows (fills the MXU M dim) while
    keeping >= min_steps grid steps when possible (v7x megacore / pipelining)."""
    divisors = [d for d in range(1, B + 1) if B % d == 0]
    fits = [d for d in divisors if d * T <= target_rows] or [1]
    bblk = max(fits)
    if B // bblk < min_steps:
        smaller = [d for d in fits if B // d >= min_steps]
        if smaller:
            bblk = max(smaller)
    return bblk


def _vmem_limit_bytes(Bblk, T, E, compute_bytes):
    """Scoped-VMEM budget: resident weights (single-buffered) + 2x-buffered
    activation/output blocks + f32 temporaries, with headroom; capped for v7x."""
    blk = Bblk * T * E
    resident_w = 4 * E * E * compute_bytes + 4 * E * 4      # (E,3E)+(E,E) weights, fused biases
    blocks = blk * compute_bytes * 2 + blk * 4 * 2          # x block (2-buf) + f32 out block (2-buf)
    temps = (3 * blk + Bblk * T * T + 2 * blk) * 4          # qkv slab, scores, attn/out (f32)
    limit = int((resident_w + blocks + temps) * 1.5) + (8 << 20)
    return max(32 << 20, min(limit, 64 << 20))


def _resident_spec(shape):
    """Grid-invariant operand: constant index_map; single-buffered when supported."""
    index_map = lambda b: (0,) * len(shape)
    if hasattr(pl, "Buffered"):
        try:
            return pl.BlockSpec(shape, index_map, pipeline_mode=pl.Buffered(1))
        except TypeError:  # older jax without BlockSpec(pipeline_mode=...)
            pass
    return pl.BlockSpec(shape, index_map)


def multi_head_attention(query_tbe, kparams, num_heads,
                         compute_dtype=jnp.float32, target_rows=256):
    """query_tbe: (T, B, E) float32, matching the PyTorch module's input layout."""
    T, B, E = query_tbe.shape
    head_dim = E // num_heads
    assert head_dim * num_heads == E

    # Layout/dtype plumbing only (no compute): batch-major, embed last (lane
    # dim); cast once here so the bf16 path DMAs half the activation bytes.
    x_bte = jnp.transpose(query_tbe, (1, 0, 2)).astype(compute_dtype)   # (B, T, E)

    Bblk = _batch_block(B, T, target_rows)
    grid = (B // Bblk,)

    kernel = functools.partial(mha_kernel, num_heads=num_heads,
                               head_dim=head_dim, compute_dtype=compute_dtype)
    vmem_limit = _vmem_limit_bytes(Bblk, T, E, jnp.dtype(compute_dtype).itemsize)

    out_bte = pl.pallas_call(
        kernel,
        out_shape=jax.ShapeDtypeStruct((B, T, E), jnp.float32),
        grid=grid,
        in_specs=[
            pl.BlockSpec((Bblk, T, E), lambda b: (b, 0, 0)),   # query block
            _resident_spec((E, 3 * E)),                        # fused [Wq|Wk|Wv]^T (Wq scaled)
            _resident_spec((E, E)),                            # Wo^T
            _resident_spec((1, 3 * E)),                        # fused [bq|bk|bv] (bq scaled)
            _resident_spec((1, E)),                            # bo
        ],
        out_specs=pl.BlockSpec((Bblk, T, E), lambda b: (b, 0, 0)),
        compiler_params=pltpu.CompilerParams(
            dimension_semantics=("parallel",),                 # v7x: shard steps over 2 TCs
            vmem_limit_bytes=vmem_limit),
    )(x_bte, kparams["wqkv"], kparams["wot"], kparams["bqkv"], kparams["bo"])

    return jnp.transpose(out_bte, (1, 0, 2))                   # back to (T, B, E)


# ------------------------- Reference (pure JAX) ----------------------------- #

def reference_mha(query_tbe, params, num_heads):
    T, B, E = query_tbe.shape
    HD = E // num_heads
    scaling = float(HD) ** -0.5
    q = query_tbe @ params["q_w"].T + params["q_b"]
    k = query_tbe @ params["k_w"].T + params["k_b"]
    v = query_tbe @ params["v_w"].T + params["v_b"]
    q = q * scaling
    q = q.reshape(T, B * num_heads, HD).transpose(1, 0, 2)
    k = k.reshape(T, B * num_heads, HD).transpose(1, 0, 2)
    v = v.reshape(T, B * num_heads, HD).transpose(1, 0, 2)
    w = jnp.einsum("ntd,nsd->nts", q, k)
    w = jax.nn.softmax(w, axis=-1)
    a = jnp.einsum("nts,nsd->ntd", w, v)
    a = a.transpose(1, 0, 2).reshape(T, B, E)
    return a @ params["o_w"].T + params["o_b"]


# ------------------------------- Params ------------------------------------ #

def xavier_uniform(key, shape, gain):
    fan_out, fan_in = shape
    limit = gain * sqrt(6.0 / (fan_in + fan_out))
    return jax.random.uniform(key, shape, jnp.float32, -limit, limit)


def init_params(key, embed_dim, init_scaling=1.0 / sqrt(2.0)):
    ks = jax.random.split(key, 8)
    bound = 1.0 / sqrt(embed_dim)
    # NOTE: the PyTorch module zero-inits out_proj; we use small random values
    # instead so the kernel's hot path is actually exercised end-to-end.
    return {
        "q_w": xavier_uniform(ks[0], (embed_dim, embed_dim), init_scaling),
        "k_w": xavier_uniform(ks[1], (embed_dim, embed_dim), init_scaling),
        "v_w": xavier_uniform(ks[2], (embed_dim, embed_dim), init_scaling),
        "o_w": xavier_uniform(ks[3], (embed_dim, embed_dim), init_scaling),
        "q_b": jax.random.uniform(ks[4], (embed_dim,), jnp.float32, -bound, bound),
        "k_b": jax.random.uniform(ks[5], (embed_dim,), jnp.float32, -bound, bound),
        "v_b": jax.random.uniform(ks[6], (embed_dim,), jnp.float32, -bound, bound),
        "o_b": jax.random.uniform(ks[7], (embed_dim,), jnp.float32, -bound, bound),
    }


# -------------------------------- Main -------------------------------------- #

if __name__ == "__main__":
    # Small but lane-dense shapes: E = 128 keeps the output last dim a full
    # lane tile (unmasked vst), head_dim = 32.
    TGT_LEN, BSZ, EMBED_DIM, NUM_HEADS = 8, 2, 128, 4

    key = jax.random.PRNGKey(0)
    k_q, k_p = jax.random.split(key)
    query = jax.random.normal(k_q, (TGT_LEN, BSZ, EMBED_DIM), jnp.float32)
    params = init_params(k_p, EMBED_DIM)

    ref = reference_mha(query, params, NUM_HEADS)

    # f32 compute path (exact softmax normalize) — tight check.
    kp_f32 = prepare_kernel_params(params, NUM_HEADS, jnp.float32)
    out_f32 = jax.block_until_ready(
        multi_head_attention(query, kp_f32, NUM_HEADS, jnp.float32))
    assert out_f32.shape == (TGT_LEN, BSZ, EMBED_DIM)
    assert jnp.allclose(out_f32, ref, atol=2e-3, rtol=2e-3), "f32 mismatch vs reference"

    # bf16 MXU path (bf16 operands cast in the wrapper, f32 accumulation,
    # f32 softmax with approx reciprocal) — looser tolerance.
    kp_bf16 = prepare_kernel_params(params, NUM_HEADS, jnp.bfloat16)
    out_bf16 = jax.block_until_ready(
        multi_head_attention(query, kp_bf16, NUM_HEADS, jnp.bfloat16))
    assert out_bf16.shape == (TGT_LEN, BSZ, EMBED_DIM)
    assert jnp.allclose(out_bf16, ref, atol=6e-2, rtol=6e-2), "bf16 mismatch vs reference"

    print("KERNEL_OK")
</pallas_src>

<mosaic_0001>
module attributes {stable_mosaic.version = 11 : i64} {
  func.func @mha_kernel(%arg0: i32, %arg1: memref<1x8x128xf32, #tpu.memory_space<vmem>>, %arg2: memref<128x384xf32, #tpu.memory_space<vmem>>, %arg3: memref<128x128xf32, #tpu.memory_space<vmem>>, %arg4: memref<1x384xf32, #tpu.memory_space<vmem>>, %arg5: memref<1x128xf32, #tpu.memory_space<vmem>>, %arg6: memref<1x8x128xf32, #tpu.memory_space<vmem>>) attributes {dimension_semantics = [#tpu.dimension_semantics<parallel>], iteration_bounds = array<i64: 2>, scalar_prefetch = 0 : i64, scratch_operands = 0 : i64, tpu.core_type = #tpu.core_type<tc>, window_params = [{transform_indices = @transform_0, window_bounds = array<i64: 1, 8, 128>}, {pipeline_mode = #tpu.pipeline_mode<synchronous>, transform_indices = @transform_1, window_bounds = array<i64: 128, 384>}, {pipeline_mode = #tpu.pipeline_mode<synchronous>, transform_indices = @transform_2, window_bounds = array<i64: 128, 128>}, {pipeline_mode = #tpu.pipeline_mode<synchronous>, transform_indices = @transform_3, window_bounds = array<i64: 1, 384>}, {pipeline_mode = #tpu.pipeline_mode<synchronous>, transform_indices = @transform_4, window_bounds = array<i64: 1, 128>}, {transform_indices = @transform_5, window_bounds = array<i64: 1, 8, 128>}]} {
    %c0 = arith.constant 0 : index
    %c0_0 = arith.constant 0 : index
    %c0_1 = arith.constant 0 : index
    %0 = vector.load %arg1[%c0, %c0_0, %c0_1] : memref<1x8x128xf32, #tpu.memory_space<vmem>>, vector<1x8x128xf32>
    %1 = vector.shape_cast %0 : vector<1x8x128xf32> to vector<8x128xf32>
    %c0_2 = arith.constant 0 : index
    %c0_3 = arith.constant 0 : index
    %2 = vector.load %arg2[%c0_2, %c0_3] : memref<128x384xf32, #tpu.memory_space<vmem>>, vector<128x384xf32>
    %cst = arith.constant dense<0.000000e+00> : vector<8x384xf32>
    %3 = tpu.matmul %1, %2, %cst {dimension_numbers = #tpu.dot_dimension_numbers<[1], [0], [0], [1], [0, 0, 1, 1], [], []>} : vector<8x128xf32>, vector<128x384xf32>, vector<8x384xf32> -> vector<8x384xf32>
    %c0_4 = arith.constant 0 : index
    %c0_5 = arith.constant 0 : index
    %4 = vector.load %arg4[%c0_4, %c0_5] : memref<1x384xf32, #tpu.memory_space<vmem>>, vector<1x384xf32>
    %5 = vector.broadcast %4 : vector<1x384xf32> to vector<8x384xf32>
    %6 = arith.addf %3, %5 : vector<8x384xf32>
    %7 = vector.shape_cast %6 : vector<8x384xf32> to vector<1x8x384xf32>
    %8 = vector.extract_strided_slice %7 {offsets = [0, 0, 0], sizes = [1, 8, 32], strides = [1, 1, 1]} : vector<1x8x384xf32> to vector<1x8x32xf32>
    %9 = vector.extract_strided_slice %7 {offsets = [0, 0, 128], sizes = [1, 8, 32], strides = [1, 1, 1]} : vector<1x8x384xf32> to vector<1x8x32xf32>
    %10 = vector.extract_strided_slice %7 {offsets = [0, 0, 256], sizes = [1, 8, 32], strides = [1, 1, 1]} : vector<1x8x384xf32> to vector<1x8x32xf32>
    "tpu.trace_start"() <{level = 10 : i32, message = "bqd,bkd->bqk"}> : () -> ()
    %cst_6 = arith.constant dense<0.000000e+00> : vector<1x8x8xf32>
    %11 = tpu.matmul %8, %9, %cst_6 {dimension_numbers = #tpu.dot_dimension_numbers<[2], [2], [1], [1], [0, 0, 0, 1, 1, 1], [0], [0]>} : vector<1x8x32xf32>, vector<1x8x32xf32>, vector<1x8x8xf32> -> vector<1x8x8xf32>
    "tpu.trace_stop"() : () -> ()
    %cst_7 = arith.constant dense<0xFF800000> : vector<1x8xf32>
    %12 = vector.multi_reduction <maximumf>, %11, %cst_7 [2] : vector<1x8x8xf32> to vector<1x8xf32>
    %13 = vector.shape_cast %12 : vector<1x8xf32> to vector<1x8x1xf32>
    %14 = vector.broadcast %13 : vector<1x8x1xf32> to vector<1x8x8xf32>
    %15 = arith.subf %11, %14 : vector<1x8x8xf32>
    %16 = math.exp %15 : vector<1x8x8xf32>
    %cst_8 = arith.constant dense<0.000000e+00> : vector<1x8xf32>
    %17 = vector.multi_reduction <add>, %16, %cst_8 [2] : vector<1x8x8xf32> to vector<1x8xf32>
    %18 = vector.shape_cast %17 : vector<1x8xf32> to vector<1x8x1xf32>
    %19 = tpu.reciprocal %18 : vector<1x8x1xf32> -> vector<1x8x1xf32>
    %20 = vector.broadcast %19 : vector<1x8x1xf32> to vector<1x8x8xf32>
    %21 = arith.mulf %16, %20 : vector<1x8x8xf32>
    "tpu.trace_start"() <{level = 10 : i32, message = "bqk,bkd->bqd"}> : () -> ()
    %cst_9 = arith.constant dense<0.000000e+00> : vector<1x8x32xf32>
    %22 = tpu.matmul %21, %10, %cst_9 {dimension_numbers = #tpu.dot_dimension_numbers<[2], [1], [1], [2], [0, 0, 0, 1, 1, 2], [0], [0]>} : vector<1x8x8xf32>, vector<1x8x32xf32>, vector<1x8x32xf32> -> vector<1x8x32xf32>
    "tpu.trace_stop"() : () -> ()
    %23 = vector.extract_strided_slice %7 {offsets = [0, 0, 32], sizes = [1, 8, 32], strides = [1, 1, 1]} : vector<1x8x384xf32> to vector<1x8x32xf32>
    %24 = vector.extract_strided_slice %7 {offsets = [0, 0, 160], sizes = [1, 8, 32], strides = [1, 1, 1]} : vector<1x8x384xf32> to vector<1x8x32xf32>
    %25 = vector.extract_strided_slice %7 {offsets = [0, 0, 288], sizes = [1, 8, 32], strides = [1, 1, 1]} : vector<1x8x384xf32> to vector<1x8x32xf32>
    "tpu.trace_start"() <{level = 10 : i32, message = "bqd,bkd->bqk"}> : () -> ()
    %cst_10 = arith.constant dense<0.000000e+00> : vector<1x8x8xf32>
    %26 = tpu.matmul %23, %24, %cst_10 {dimension_numbers = #tpu.dot_dimension_numbers<[2], [2], [1], [1], [0, 0, 0, 1, 1, 1], [0], [0]>} : vector<1x8x32xf32>, vector<1x8x32xf32>, vector<1x8x8xf32> -> vector<1x8x8xf32>
    "tpu.trace_stop"() : () -> ()
    %cst_11 = arith.constant dense<0xFF800000> : vector<1x8xf32>
    %27 = vector.multi_reduction <maximumf>, %26, %cst_11 [2] : vector<1x8x8xf32> to vector<1x8xf32>
    %28 = vector.shape_cast %27 : vector<1x8xf32> to vector<1x8x1xf32>
    %29 = vector.broadcast %28 : vector<1x8x1xf32> to vector<1x8x8xf32>
    %30 = arith.subf %26, %29 : vector<1x8x8xf32>
    %31 = math.exp %30 : vector<1x8x8xf32>
    %cst_12 = arith.constant dense<0.000000e+00> : vector<1x8xf32>
    %32 = vector.multi_reduction <add>, %31, %cst_12 [2] : vector<1x8x8xf32> to vector<1x8xf32>
    %33 = vector.shape_cast %32 : vector<1x8xf32> to vector<1x8x1xf32>
    %34 = tpu.reciprocal %33 : vector<1x8x1xf32> -> vector<1x8x1xf32>
    %35 = vector.broadcast %34 : vector<1x8x1xf32> to vector<1x8x8xf32>
    %36 = arith.mulf %31, %35 : vector<1x8x8xf32>
    "tpu.trace_start"() <{level = 10 : i32, message = "bqk,bkd->bqd"}> : () -> ()
    %cst_13 = arith.constant dense<0.000000e+00> : vector<1x8x32xf32>
    %37 = tpu.matmul %36, %25, %cst_13 {dimension_numbers = #tpu.dot_dimension_numbers<[2], [1], [1], [2], [0, 0, 0, 1, 1, 2], [0], [0]>} : vector<1x8x8xf32>, vector<1x8x32xf32>, vector<1x8x32xf32> -> vector<1x8x32xf32>
    "tpu.trace_stop"() : () -> ()
    %38 = vector.extract_strided_slice %7 {offsets = [0, 0, 64], sizes = [1, 8, 32], strides = [1, 1, 1]} : vector<1x8x384xf32> to vector<1x8x32xf32>
    %39 = vector.extract_strided_slice %7 {offsets = [0, 0, 192], sizes = [1, 8, 32], strides = [1, 1, 1]} : vector<1x8x384xf32> to vector<1x8x32xf32>
    %40 = vector.extract_strided_slice %7 {offsets = [0, 0, 320], sizes = [1, 8, 32], strides = [1, 1, 1]} : vector<1x8x384xf32> to vector<1x8x32xf32>
    "tpu.trace_start"() <{level = 10 : i32, message = "bqd,bkd->bqk"}> : () -> ()
    %cst_14 = arith.constant dense<0.000000e+00> : vector<1x8x8xf32>
    %41 = tpu.matmul %38, %39, %cst_14 {dimension_numbers = #tpu.dot_dimension_numbers<[2], [2], [1], [1], [0, 0, 0, 1, 1, 1], [0], [0]>} : vector<1x8x32xf32>, vector<1x8x32xf32>, vector<1x8x8xf32> -> vector<1x8x8xf32>
    "tpu.trace_stop"() : () -> ()
    %cst_15 = arith.constant dense<0xFF800000> : vector<1x8xf32>
    %42 = vector.multi_reduction <maximumf>, %41, %cst_15 [2] : vector<1x8x8xf32> to vector<1x8xf32>
    %43 = vector.shape_cast %42 : vector<1x8xf32> to vector<1x8x1xf32>
    %44 = vector.broadcast %43 : vector<1x8x1xf32> to vector<1x8x8xf32>
    %45 = arith.subf %41, %44 : vector<1x8x8xf32>
    %46 = math.exp %45 : vector<1x8x8xf32>
    %cst_16 = arith.constant dense<0.000000e+00> : vector<1x8xf32>
    %47 = vector.multi_reduction <add>, %46, %cst_16 [2] : vector<1x8x8xf32> to vector<1x8xf32>
    %48 = vector.shape_cast %47 : vector<1x8xf32> to vector<1x8x1xf32>
    %49 = tpu.reciprocal %48 : vector<1x8x1xf32> -> vector<1x8x1xf32>
    %50 = vector.broadcast %49 : vector<1x8x1xf32> to vector<1x8x8xf32>
    %51 = arith.mulf %46, %50 : vector<1x8x8xf32>
    "tpu.trace_start"() <{level = 10 : i32, message = "bqk,bkd->bqd"}> : () -> ()
    %cst_17 = arith.constant dense<0.000000e+00> : vector<1x8x32xf32>
    %52 = tpu.matmul %51, %40, %cst_17 {dimension_numbers = #tpu.dot_dimension_numbers<[2], [1], [1], [2], [0, 0, 0, 1, 1, 2], [0], [0]>} : vector<1x8x8xf32>, vector<1x8x32xf32>, vector<1x8x32xf32> -> vector<1x8x32xf32>
    "tpu.trace_stop"() : () -> ()
    %53 = vector.extract_strided_slice %7 {offsets = [0, 0, 96], sizes = [1, 8, 32], strides = [1, 1, 1]} : vector<1x8x384xf32> to vector<1x8x32xf32>
    %54 = vector.extract_strided_slice %7 {offsets = [0, 0, 224], sizes = [1, 8, 32], strides = [1, 1, 1]} : vector<1x8x384xf32> to vector<1x8x32xf32>
    %55 = vector.extract_strided_slice %7 {offsets = [0, 0, 352], sizes = [1, 8, 32], strides = [1, 1, 1]} : vector<1x8x384xf32> to vector<1x8x32xf32>
    "tpu.trace_start"() <{level = 10 : i32, message = "bqd,bkd->bqk"}> : () -> ()
    %cst_18 = arith.constant dense<0.000000e+00> : vector<1x8x8xf32>
    %56 = tpu.matmul %53, %54, %cst_18 {dimension_numbers = #tpu.dot_dimension_numbers<[2], [2], [1], [1], [0, 0, 0, 1, 1, 1], [0], [0]>} : vector<1x8x32xf32>, vector<1x8x32xf32>, vector<1x8x8xf32> -> vector<1x8x8xf32>
    "tpu.trace_stop"() : () -> ()
    %cst_19 = arith.constant dense<0xFF800000> : vector<1x8xf32>
    %57 = vector.multi_reduction <maximumf>, %56, %cst_19 [2] : vector<1x8x8xf32> to vector<1x8xf32>
    %58 = vector.shape_cast %57 : vector<1x8xf32> to vector<1x8x1xf32>
    %59 = vector.broadcast %58 : vector<1x8x1xf32> to vector<1x8x8xf32>
    %60 = arith.subf %56, %59 : vector<1x8x8xf32>
    %61 = math.exp %60 : vector<1x8x8xf32>
    %cst_20 = arith.constant dense<0.000000e+00> : vector<1x8xf32>
    %62 = vector.multi_reduction <add>, %61, %cst_20 [2] : vector<1x8x8xf32> to vector<1x8xf32>
    %63 = vector.shape_cast %62 : vector<1x8xf32> to vector<1x8x1xf32>
    %64 = tpu.reciprocal %63 : vector<1x8x1xf32> -> vector<1x8x1xf32>
    %65 = vector.broadcast %64 : vector<1x8x1xf32> to vector<1x8x8xf32>
    %66 = arith.mulf %61, %65 : vector<1x8x8xf32>
    "tpu.trace_start"() <{level = 10 : i32, message = "bqk,bkd->bqd"}> : () -> ()
    %cst_21 = arith.constant dense<0.000000e+00> : vector<1x8x32xf32>
    %67 = tpu.matmul %66, %55, %cst_21 {dimension_numbers = #tpu.dot_dimension_numbers<[2], [1], [1], [2], [0, 0, 0, 1, 1, 2], [0], [0]>} : vector<1x8x8xf32>, vector<1x8x32xf32>, vector<1x8x32xf32> -> vector<1x8x32xf32>
    "tpu.trace_stop"() : () -> ()
    %68 = tpu.concatenate %22, %37, %52, %67 in 2 : vector<1x8x32xf32>, vector<1x8x32xf32>, vector<1x8x32xf32>, vector<1x8x32xf32> -> vector<1x8x128xf32>
    %69 = vector.shape_cast %68 : vector<1x8x128xf32> to vector<8x128xf32>
    %c0_22 = arith.constant 0 : index
    %c0_23 = arith.constant 0 : index
    %70 = vector.load %arg3[%c0_22, %c0_23] : memref<128x128xf32, #tpu.memory_space<vmem>>, vector<128x128xf32>
    %cst_24 = arith.constant dense<0.000000e+00> : vector<8x128xf32>
    %71 = tpu.matmul %69, %70, %cst_24 {dimension_numbers = #tpu.dot_dimension_numbers<[1], [0], [0], [1], [0, 0, 1, 1], [], []>} : vector<8x128xf32>, vector<128x128xf32>, vector<8x128xf32> -> vector<8x128xf32>
    %c0_25 = arith.constant 0 : index
    %c0_26 = arith.constant 0 : index
    %72 = vector.load %arg5[%c0_25, %c0_26] : memref<1x128xf32, #tpu.memory_space<vmem>>, vector<1x128xf32>
    %73 = vector.broadcast %72 : vector<1x128xf32> to vector<8x128xf32>
    %74 = arith.addf %71, %73 : vector<8x128xf32>
    %75 = vector.shape_cast %74 : vector<8x128xf32> to vector<1x8x128xf32>
    %c0_27 = arith.constant 0 : index
    %c0_28 = arith.constant 0 : index
    %c0_29 = arith.constant 0 : index
    %76 = vector.load %arg6[%c0_27, %c0_28, %c0_29] : memref<1x8x128xf32, #tpu.memory_space<vmem>>, vector<1x8x128xf32>
    tpu.vector_store %arg6[%c0_27, %c0_28, %c0_29], %75 {strides = array<i32>} : memref<1x8x128xf32, #tpu.memory_space<vmem>>, vector<1x8x128xf32>,
    return
  }
  func.func @transform_0(%arg0: i32) -> (i32, i32, i32) {
    %c0_i32 = arith.constant 0 : i32
    %c0_i32_0 = arith.constant 0 : i32
    %c0_i32_1 = arith.constant 0 : i32
    return %arg0, %c0_i32, %c0_i32_0 : i32, i32, i32
  }
  func.func @transform_1(%arg0: i32) -> (i32, i32) {
    %c0_i32 = arith.constant 0 : i32
    %c0_i32_0 = arith.constant 0 : i32
    %c0_i32_1 = arith.constant 0 : i32
    return %c0_i32, %c0_i32_0 : i32, i32
  }
  func.func @transform_2(%arg0: i32) -> (i32, i32) {
    %c0_i32 = arith.constant 0 : i32
    %c0_i32_0 = arith.constant 0 : i32
    %c0_i32_1 = arith.constant 0 : i32
    return %c0_i32, %c0_i32_0 : i32, i32
  }
  func.func @transform_3(%arg0: i32) -> (i32, i32) {
    %c0_i32 = arith.constant 0 : i32
    %c0_i32_0 = arith.constant 0 : i32
    %c0_i32_1 = arith.constant 0 : i32
    return %c0_i32, %c0_i32_0 : i32, i32
  }
  func.func @transform_4(%arg0: i32) -> (i32, i32) {
    %c0_i32 = arith.constant 0 : i32
    %c0_i32_0 = arith.constant 0 : i32
    %c0_i32_1 = arith.constant 0 : i32
    return %c0_i32, %c0_i32_0 : i32, i32
  }
  func.func @transform_5(%arg0: i32) -> (i32, i32, i32) {
    %c0_i32 = arith.constant 0 : i32
    %c0_i32_0 = arith.constant 0 : i32
    %c0_i32_1 = arith.constant 0 : i32
    return %arg0, %c0_i32, %c0_i32_0 : i32, i32, i32
  }
}

</mosaic_0001>

<llo_original>
// kernel: tpu_custom_call.1
$region0: #{tpu_custom_call.1}
  #allocation0 [shape = 'u32[]', space=smem, size = 0x4, offset = 0x4, fixed_abs, tag = 'smem constant byte address 0x4 - core index']
  #allocation1 [shape = 'u32[144,128]{1,0:T(1,128)}', space=vmem, size = 0x12000, scoped, tag = 'internal scratch']
  %s0 = inlined_call_operand.hbm [shape: f32[2,8,128], index: 0, kind: input, shape index: {}]
  %s1 = inlined_call_operand.hbm [shape: f32[128,384], index: 1, kind: input, shape index: {}]
  %s2 = inlined_call_operand.hbm [shape: f32[128,128], index: 2, kind: input, shape index: {}]
  %s3 = inlined_call_operand.vmem [shape: f32[1,384], index: 3, kind: input, shape index: {}]
  %s4 = inlined_call_operand.vmem [shape: f32[1,128], index: 4, kind: input, shape index: {}]
  %s5 = inlined_call_operand.hbm [shape: f32[2,8,128], index: 5, kind: output, shape index: {}]
  %s6 = sld [smem:[#allocation0]]
  $region65: #{tpu_custom_call.1} parent=0
    _
  %s8 = ssub.s32 1, %s6
  %s9 = scalar_select 0, %s8, %s6
  $region1: #{tpu_custom_call.1} parent=0
    #allocation2 [shape = 'u8[8192]{0}', space=vmem, size = 0x2000, scoped, tag = 'input window, operand 0']
    #allocation3 [shape = 's32[2]{0}', space=sflag, size = 0x8, scoped, tag = 'scoped memory for tpu_custom_call.1']
    #allocation4 [shape = 's32[2]{0}', space=sflag, size = 0x8, scoped, tag = 'scoped memory for tpu_custom_call.1']
    #allocation5 [shape = 'u8[196608]{0}', space=vmem, size = 0x30000, scoped, tag = 'input window, operand 1, single buffered']
    #allocation6 [shape = 's32[1]{0}', space=sflag, size = 0x4, scoped, tag = 'scoped memory for tpu_custom_call.1']
    #allocation7 [shape = 'u8[65536]{0}', space=vmem, size = 0x10000, scoped, tag = 'input window, operand 2, single buffered']
    #allocation8 [shape = 'u8[8192]{0}', space=vmem, size = 0x2000, scoped, tag = 'output window, operand 0']
    %10 = vsyncpa [#allocation3], 0
    %s11 = scalar_lea.sflag [#allocation3], 1
    %12 = vsyncpa %s11, 0
    %13 = vsyncpa [#allocation6], 0
    %14 = vsyncpa [#allocation4], 0
    %s15 = scalar_lea.sflag [#allocation4], 1
    %16 = vsyncpa %s15, 0
    loop: start=0, step=1, limit=4
    $region2: #{tpu_custom_call.1} parent=1 // loop_pre_header
      _
    $region3: #{tpu_custom_call.1} parent=1 // loop_header
      %s18 = sphi 0, %s22
      %p19 = scmp.ge.s32.totalorder %s18, 4
      %s28 = sphi 0, %s30
      %s31 = sphi 0, %s28
      %s32 = sphi 0, %s31
      %s48 = sphi 0, %s32
      %s52 = sphi 0, %s52
      %s54 = sphi 0, %s52
      %s55 = sphi 0, %s54
      %s69 = sphi 0, %s55
      %s73 = sphi 0, %s73
      %s75 = sphi 0, %s73
      %s76 = sphi 0, %s75
      %s90 = sphi 0, %s76
      %s94 = sphi 0, %s94
      %s96 = sphi 0, %s94
      %s97 = sphi 0, %s96
      %s111 = sphi 0, %s97
      %s115 = sphi 0, %s115
      %s117 = sphi 0, %s115
      %s118 = sphi 0, %s117
      %s132 = sphi 0, %s118
      %s138 = sphi 0, %s140
      %s141 = sphi 0, %s138
      %s142 = sphi 0, %s141
      %s158 = sphi 0, %s142
    $region4: #{tpu_custom_call.1} parent=1 // loop_header_branch
      %21 = sbr.rel (%p19) target = $region8
    $region5: #{tpu_custom_call.1} parent=1 // loop_body
      %s23 = ssub.s32 %s18, 1
      %s24 = ssub.s32 %s18, 2
      %s25 = sadd.s32 %s18, 1
      %s26 = ssub.s32 %s18, %s25
      %p27 = scmp.eq.s32.totalorder %s26, 0
      %s29 = sadd.s32 %s28, 1
      %s30 = scalar_select %p27, %s28, %s29
      %p33 = pneg %p27
      %p34 = scmp.eq.s32.totalorder %s18, 1
      %p35 = por %p33, %p34
      %p36 = scmp.ne.s32.totalorder %s28, %s31
      %p37 = scmp.eq.s32.totalorder %s18, 0
      %p38 = por %p36, %p37
      %p39 = scmp.ne.s32.totalorder %s28, %s31
      %p40 = scmp.eq.s32.totalorder %s23, 1
      %p41 = por %p39, %p40
      %p42 = scmp.ne.s32.totalorder %s31, %s32
      %p43 = scmp.eq.s32.totalorder %s23, 0
      %p44 = por %p42, %p43
      %p45 = scmp.ne.s32.totalorder %s31, %s32
      %p46 = scmp.eq.s32.totalorder %s24, 1
      %p47 = por %p45, %p46
      %p49 = scmp.ne.s32.totalorder %s32, %s48
      %p50 = scmp.eq.s32.totalorder %s24, 0
      %p51 = por %p49, %p50
      %s53 = sadd.s32 %s52, 1
      %p56 = scmp.eq.s32.totalorder %s18, 1
      %p57 = scmp.ne.s32.totalorder %s52, %s54
      %p58 = scmp.eq.s32.totalorder %s18, 0
      %p59 = por %p57, %p58
      %p60 = scmp.ne.s32.totalorder %s52, %s54
      %p61 = scmp.eq.s32.totalorder %s23, 1
      %p62 = por %p60, %p61
      %p63 = scmp.ne.s32.totalorder %s54, %s55
      %p64 = scmp.eq.s32.totalorder %s23, 0
      %p65 = por %p63, %p64
      %p66 = scmp.ne.s32.totalorder %s54, %s55
      %p67 = scmp.eq.s32.totalorder %s24, 1
      %p68 = por %p66, %p67
      %p70 = scmp.ne.s32.totalorder %s55, %s69
      %p71 = scmp.eq.s32.totalorder %s24, 0
      %p72 = por %p70, %p71
      %s74 = sadd.s32 %s73, 1
      %p77 = scmp.eq.s32.totalorder %s18, 1
      %p78 = scmp.ne.s32.totalorder %s73, %s75
      %p79 = scmp.eq.s32.totalorder %s18, 0
      %p80 = por %p78, %p79
      %p81 = scmp.ne.s32.totalorder %s73, %s75
      %p82 = scmp.eq.s32.totalorder %s23, 1
      %p83 = por %p81, %p82
      %p84 = scmp.ne.s32.totalorder %s75, %s76
      %p85 = scmp.eq.s32.totalorder %s23, 0
      %p86 = por %p84, %p85
      %p87 = scmp.ne.s32.totalorder %s75, %s76
      %p88 = scmp.eq.s32.totalorder %s24, 1
      %p89 = por %p87, %p88
      %p91 = scmp.ne.s32.totalorder %s76, %s90
      %p92 = scmp.eq.s32.totalorder %s24, 0
      %p93 = por %p91, %p92
      %s95 = sadd.s32 %s94, 1
      %p98 = scmp.eq.s32.totalorder %s18, 1
      %p99 = scmp.ne.s32.totalorder %s94, %s96
      %p100 = scmp.eq.s32.totalorder %s18, 0
      %p101 = por %p99, %p100
      %p102 = scmp.ne.s32.totalorder %s94, %s96
      %p103 = scmp.eq.s32.totalorder %s23, 1
      %p104 = por %p102, %p103
      %p105 = scmp.ne.s32.totalorder %s96, %s97
      %p106 = scmp.eq.s32.totalorder %s23, 0
      %p107 = por %p105, %p106
      %p108 = scmp.ne.s32.totalorder %s96, %s97
      %p109 = scmp.eq.s32.totalorder %s24, 1
      %p110 = por %p108, %p109
      %p112 = scmp.ne.s32.totalorder %s97, %s111
      %p113 = scmp.eq.s32.totalorder %s24, 0
      %p114 = por %p112, %p113
      %s116 = sadd.s32 %s115, 1
      %p119 = scmp.eq.s32.totalorder %s18, 1
      %p120 = scmp.ne.s32.totalorder %s115, %s117
      %p121 = scmp.eq.s32.totalorder %s18, 0
      %p122 = por %p120, %p121
      %p123 = scmp.ne.s32.totalorder %s115, %s117
      %p124 = scmp.eq.s32.totalorder %s23, 1
      %p125 = por %p123, %p124
      %p126 = scmp.ne.s32.totalorder %s117, %s118
      %p127 = scmp.eq.s32.totalorder %s23, 0
      %p128 = por %p126, %p127
      %p129 = scmp.ne.s32.totalorder %s117, %s118
      %p130 = scmp.eq.s32.totalorder %s24, 1
      %p131 = por %p129, %p130
      %p133 = scmp.ne.s32.totalorder %s118, %s132
      %p134 = scmp.eq.s32.totalorder %s24, 0
      %p135 = por %p133, %p134
      %s136 = ssub.s32 %s18, %s25
      %p137 = scmp.eq.s32.totalorder %s136, 0
      %s139 = sadd.s32 %s138, 1
      %s140 = scalar_select %p137, %s138, %s139
      %p143 = pneg %p137
      %p144 = scmp.eq.s32.totalorder %s18, 1
      %p145 = por %p143, %p144
      %p146 = scmp.ne.s32.totalorder %s138, %s141
      %p147 = scmp.eq.s32.totalorder %s18, 0
      %p148 = por %p146, %p147
      %p149 = scmp.ne.s32.totalorder %s138, %s141
      %p150 = scmp.eq.s32.totalorder %s23, 1
      %p151 = por %p149, %p150
      %p152 = scmp.ne.s32.totalorder %s141, %s142
      %p153 = scmp.eq.s32.totalorder %s23, 0
      %p154 = por %p152, %p153
      %p155 = scmp.ne.s32.totalorder %s141, %s142
      %p156 = scmp.eq.s32.totalorder %s24, 1
      %p157 = por %p155, %p156
      %p159 = scmp.ne.s32.totalorder %s142, %s158
      %p160 = scmp.eq.s32.totalorder %s24, 0
      %p161 = por %p159, %p160
      %p162 = scmp.le.s32.totalorder 1, %s18
      %p163 = scmp.lt.s32.totalorder %s18, 3
      %p164 = pnand %p162, %p163
      %p165 = pneg %p164
      // Predicated region
      $region9: #{tpu_custom_call.1} parent=5 // pred_check
        _
      $region10: #{tpu_custom_call.1} parent=5 // pred_check_branch
        %167 = sbr.rel (%p164) target = $region12
      $region11: #{tpu_custom_call.1} parent=5 // pred_region
        %s168 = ssub.s32 %s18, 1
        // Predicated region
        $region13: #{tpu_custom_call.1} parent=11 // pred_check
          %p169 = pneg %p65
        $region14: #{tpu_custom_call.1} parent=11 // pred_check_branch
          %171 = sbr.rel (%p169) target = $region16
        $region15: #{tpu_custom_call.1} parent=11 // pred_region
          %s173 = ssub.s32 6144, 6144
          %174 = vsyncadd [#allocation6], %s173
          %s175 = sshll.u32 [#allocation5], 4
          %s176 = int_to_ptr.vmem [resolvable:$true] %s175
          %181 = dma.hbm_to_vmem [thread:$0]  %s1, 6144, %s176, [#allocation6], 384, 384, 24
        $region16: #{tpu_custom_call.1} parent=11 // pred_fallthru
          _
        // Predicated region
        $region17: #{tpu_custom_call.1} parent=11 // pred_check
          %p182 = pneg %p86
        $region18: #{tpu_custom_call.1} parent=11 // pred_check_branch
          %184 = sbr.rel (%p182) target = $region20
        $region19: #{tpu_custom_call.1} parent=11 // pred_region
          %s186 = ssub.s32 2048, 2048
          %187 = vsyncadd [#allocation6], %s186
          %s188 = sshll.u32 [#allocation7], 4
          %s189 = int_to_ptr.vmem [resolvable:$true] %s188
          %194 = dma.hbm_to_vmem [thread:$0]  %s2, 2048, %s189, [#allocation6], 128, 128, 8
        $region20: #{tpu_custom_call.1} parent=11 // pred_fallthru
          _
        // Predicated region
        $region21: #{tpu_custom_call.1} parent=11 // pred_check
          %p195 = pneg %p107
        $region22: #{tpu_custom_call.1} parent=11 // pred_check_branch
          %197 = sbr.rel (%p195) target = $region24
        $region23: #{tpu_custom_call.1} parent=11 // pred_region
          _
        $region24: #{tpu_custom_call.1} parent=11 // pred_fallthru
          _
        // Predicated region
        $region25: #{tpu_custom_call.1} parent=11 // pred_check
          %p198 = pneg %p128
        $region26: #{tpu_custom_call.1} parent=11 // pred_check_branch
          %200 = sbr.rel (%p198) target = $region28
        $region27: #{tpu_custom_call.1} parent=11 // pred_region
          _
        $region28: #{tpu_custom_call.1} parent=11 // pred_fallthru
          _
      $region12: #{tpu_custom_call.1} parent=5 // pred_fallthru
        _
      %p201 = scmp.lt.s32.totalorder %s18, 2
      // Predicated region
      $region29: #{tpu_custom_call.1} parent=5 // pred_check
        %p202 = pneg %p201
      $region30: #{tpu_custom_call.1} parent=5 // pred_check_branch
        %204 = sbr.rel (%p202) target = $region32
      $region31: #{tpu_custom_call.1} parent=5 // pred_region
        // Predicated region
        $region33: #{tpu_custom_call.1} parent=31 // pred_check
          %p205 = pneg %p38
        $region34: #{tpu_custom_call.1} parent=31 // pred_check_branch
          %207 = sbr.rel (%p205) target = $region36
        $region35: #{tpu_custom_call.1} parent=31 // pred_region
          %s208 = sand.u32 %s28, 1
          %s209 = scalar_lea.sflag [#allocation3], %s208
          %s210 = sand.u32 %s28, 1
          %s211 = smul.addr %s210, 8
          %s212 = scalar_lea.vmem [#allocation2], %s211
          %s214 = ssub.s32 128, 128
          %215 = vsyncadd %s209, %s214
          %s216 = smul.addr %s18, 128
          %s217 = scalar_lea.hbm %s0, %s216
          %s219 = sshll.u32 %s212, 4
          %s220 = int_to_ptr.vmem [resolvable:$true] %s219
          %222 = dma.hbm_to_vmem [thread:$0]  %s217, 128, %s220, %s209
        $region36: #{tpu_custom_call.1} parent=31 // pred_fallthru
          _
      $region32: #{tpu_custom_call.1} parent=5 // pred_fallthru
        _
      %p223 = scmp.le.s32.totalorder 1, %s18
      %p224 = scmp.lt.s32.totalorder %s18, 3
      %p225 = pnand %p223, %p224
      %p226 = pneg %p225
      // Predicated region
      $region37: #{tpu_custom_call.1} parent=5 // pred_check
        _
      $region38: #{tpu_custom_call.1} parent=5 // pred_check_branch
        %228 = sbr.rel (%p225) target = $region40
      $region39: #{tpu_custom_call.1} parent=5 // pred_region
        %s229 = ssub.s32 %s18, 1
        %s230 = sand.u32 %s31, 1
        %s231 = scalar_lea.sflag [#allocation3], %s230
        %s232 = sand.u32 %s31, 1
        %s233 = smul.addr %s232, 8
        %s234 = scalar_lea.vmem [#allocation2], %s233
        // Predicated region
        $region41: #{tpu_custom_call.1} parent=39 // pred_check
          %p235 = pneg %p44
        $region42: #{tpu_custom_call.1} parent=39 // pred_check_branch
          %237 = sbr.rel (%p235) target = $region44
        $region43: #{tpu_custom_call.1} parent=39 // pred_region
          %238 = dma.done %s231, 128
        $region44: #{tpu_custom_call.1} parent=39 // pred_fallthru
          _
        // Predicated region
        $region45: #{tpu_custom_call.1} parent=39 // pred_check
          %p239 = pneg %p65
        $region46: #{tpu_custom_call.1} parent=39 // pred_check_branch
          %241 = sbr.rel (%p239) target = $region48
        $region47: #{tpu_custom_call.1} parent=39 // pred_region
          %242 = dma.done [#allocation6], 6144
        $region48: #{tpu_custom_call.1} parent=39 // pred_fallthru
          _
        // Predicated region
        $region49: #{tpu_custom_call.1} parent=39 // pred_check
          %p243 = pneg %p86
        $region50: #{tpu_custom_call.1} parent=39 // pred_check_branch
          %245 = sbr.rel (%p243) target = $region52
        $region51: #{tpu_custom_call.1} parent=39 // pred_region
          %246 = dma.done [#allocation6], 2048
        $region52: #{tpu_custom_call.1} parent=39 // pred_fallthru
          _
        %s247 = sand.u32 %s31, 1
        %s248 = scalar_lea.sflag [#allocation3], %s247
        %s249 = sand.u32 %s31, 1
        %s250 = smul.addr %s249, 8
        %s251 = scalar_lea.vmem [#allocation2], %s250
        %p252 = pneg %p44
        %p253 = pneg %p41
        %p254 = pneg %p65
        %p255 = pneg %p62
        %p256 = pneg %p86
        %p257 = pneg %p83
        %p258 = pneg %p107
        %p259 = pneg %p104
        %p260 = pneg %p128
        %p261 = pneg %p125
        %p262 = pneg %p154
        %p263 = pneg %p151
        %s264 = sand.u32 %s141, 1
        %s265 = scalar_lea.sflag [#allocation4], %s264
        %s266 = sand.u32 %s141, 1
        %s267 = smul.addr %s266, 8
        %s268 = scalar_lea.vmem [#allocation8], %s267
        %v269 = vld [vmem:[%s234] sm:$0xff]
        %v270 = vld [vmem:[#allocation5] sm:$0xff]
        %v271 = vld [vmem:[#allocation5 + $0x8] sm:$0xff]
        %v272 = vld [vmem:[#allocation5 + $0x10] sm:$0xff]
        %v273 = vld [vmem:[#allocation5 + $0x18] sm:$0xff]
        %v274 = vld [vmem:[#allocation5 + $0x20] sm:$0xff]
        %v275 = vld [vmem:[#allocation5 + $0x28] sm:$0xff]
        %v276 = vld [vmem:[#allocation5 + $0x30] sm:$0xff]
        %v277 = vld [vmem:[#allocation5 + $0x38] sm:$0xff]
        %v278 = vld [vmem:[#allocation5 + $0x40] sm:$0xff]
        %v279 = vld [vmem:[#allocation5 + $0x48] sm:$0xff]
        %v280 = vld [vmem:[#allocation5 + $0x50] sm:$0xff]
        %v281 = vld [vmem:[#allocation5 + $0x58] sm:$0xff]
        %v282 = vld [vmem:[#allocation5 + $0x60] sm:$0xff]
        %v283 = vld [vmem:[#allocation5 + $0x68] sm:$0xff]
        %v284 = vld [vmem:[#allocation5 + $0x70] sm:$0xff]
        %v285 = vld [vmem:[#allocation5 + $0x78] sm:$0xff]
        %v286 = vld [vmem:[#allocation5 + $0x80] sm:$0xff]
        %v287 = vld [vmem:[#allocation5 + $0x88] sm:$0xff]
        %v288 = vld [vmem:[#allocation5 + $0x90] sm:$0xff]
        %v289 = vld [vmem:[#allocation5 + $0x98] sm:$0xff]
        %v290 = vld [vmem:[#allocation5 + $0xa0] sm:$0xff]
        %v291 = vld [vmem:[#allocation5 + $0xa8] sm:$0xff]
        %v292 = vld [vmem:[#allocation5 + $0xb0] sm:$0xff]
        %v293 = vld [vmem:[#allocation5 + $0xb8] sm:$0xff]
        %v294 = vld [vmem:[#allocation5 + $0xc0] sm:$0xff]
        %v295 = vld [vmem:[#allocation5 + $0xc8] sm:$0xff]
        %v296 = vld [vmem:[#allocation5 + $0xd0] sm:$0xff]
        %v297 = vld [vmem:[#allocation5 + $0xd8] sm:$0xff]
        %v298 = vld [vmem:[#allocation5 + $0xe0] sm:$0xff]
        %v299 = vld [vmem:[#allocation5 + $0xe8] sm:$0xff]
        %v300 = vld [vmem:[#allocation5 + $0xf0] sm:$0xff]
        %v301 = vld [vmem:[#allocation5 + $0xf8] sm:$0xff]
        %v302 = vld [vmem:[#allocation5 + $0x100] sm:$0xff]
        %v303 = vld [vmem:[#allocation5 + $0x108] sm:$0xff]
        %v304 = vld [vmem:[#allocation5 + $0x110] sm:$0xff]
        %v305 = vld [vmem:[#allocation5 + $0x118] sm:$0xff]
        %v306 = vld [vmem:[#allocation5 + $0x120] sm:$0xff]
        %v307 = vld [vmem:[#allocation5 + $0x128] sm:$0xff]
        %v308 = vld [vmem:[#allocation5 + $0x130] sm:$0xff]
        %v309 = vld [vmem:[#allocation5 + $0x138] sm:$0xff]
        %v310 = vld [vmem:[#allocation5 + $0x140] sm:$0xff]
        %v311 = vld [vmem:[#allocation5 + $0x148] sm:$0xff]
        %v312 = vld [vmem:[#allocation5 + $0x150] sm:$0xff]
        %v313 = vld [vmem:[#allocation5 + $0x158] sm:$0xff]
        %v314 = vld [vmem:[#allocation5 + $0x160] sm:$0xff]
        %v315 = vld [vmem:[#allocation5 + $0x168] sm:$0xff]
        %v316 = vld [vmem:[#allocation5 + $0x170] sm:$0xff]
        %v317 = vld [vmem:[#allocation5 + $0x178] sm:$0xff]
        %v318 = vld [vmem:[%s3] sm:$0x7]
        %v320 = vlaneseq
        %v321 = vshrl.u32 %v320, 7
        %v322 = vsub.s32 0, %v321
        %v323 = vrot.slane %v318, %v322
        %v324 = vlaneseq
        %v325 = vshrl.u32 %v324, 7
        %v326 = vsub.s32 1, %v325
        %v327 = vrot.slane %v318, %v326
        %v328 = vlaneseq
        %v329 = vshrl.u32 %v328, 7
        %v330 = vsub.s32 2, %v329
        %v331 = vrot.slane %v318, %v330
        %335 = vmatprep.subr.mxu0 %v271
        %336 = vmatpush1.msra.mxu0 %v270
        %337 = vmatprep.subr.mxu0 %v274
        %338 = vmatpush1.msra.mxu0 %v273
        %339 = vmatprep.subr.mxu0 %v277
        %340 = vmatpush1.msra.mxu0 %v276
        %341 = vmatprep.subr.mxu0 %v280
        %342 = vmatpush1.msra.mxu0 %v279
        %343 = vmatprep.subr.mxu0 %v283
        %344 = vmatpush1.msra.mxu0 %v282
        %345 = vmatprep.subr.mxu0 %v286
        %346 = vmatpush1.msra.mxu0 %v285
        %347 = vmatprep.subr.mxu0 %v289
        %348 = vmatpush1.msra.mxu0 %v288
        %349 = vmatprep.subr.mxu0 %v292
        %350 = vmatpush1.msra.mxu0 %v291
        %351 = vmatprep.subr.mxu0 %v295
        %352 = vmatpush1.msra.mxu0 %v294
        %353 = vmatprep.subr.mxu0 %v298
        %354 = vmatpush1.msra.mxu0 %v297
        %355 = vmatprep.subr.mxu0 %v301
        %356 = vmatpush1.msra.mxu0 %v300
        %357 = vmatprep.subr.mxu0 %v304
        %358 = vmatpush1.msra.mxu0 %v303
        %359 = vmatprep.subr.mxu0 %v307
        %360 = vmatpush1.msra.mxu0 %v306
        %361 = vmatprep.subr.mxu0 %v310
        %362 = vmatpush1.msra.mxu0 %v309
        %363 = vmatprep.subr.mxu0 %v313
        %364 = vmatpush1.msra.mxu0 %v312
        %365 = vmatprep.subr.mxu0 %v316
        %366 = vmatpush1.msra.mxu0 %v315
        %367 = vmatprep.subr.mxu0 0.0
        %368 = vmatpush1.msra.mxu0 0.0
        %369 = vmatprep.subr.mxu0 0.0
        %370 = vmatpush1.msra.mxu0 0.0
        %371 = vmatprep.subr.mxu0 0.0
        %372 = vmatpush1.msra.mxu0 0.0
        %373 = vmatprep.subr.mxu0 0.0
        %374 = vmatpush1.msra.mxu0 0.0
        %375 = vmatprep.subr.mxu0 0.0
        %376 = vmatpush1.msra.mxu0 0.0
        %377 = vmatprep.subr.mxu0 0.0
        %378 = vmatpush1.msra.mxu0 0.0
        %379 = vmatprep.subr.mxu0 0.0
        %380 = vmatpush1.msra.mxu0 0.0
        %381 = vmatprep.subr.mxu0 0.0
        %382 = vmatpush1.msra.mxu0 0.0
        %383 = vmatprep.subr.mxu0 0.0
        %384 = vmatpush1.msra.mxu0 0.0
        %385 = vmatprep.subr.mxu0 0.0
        %386 = vmatpush1.msra.mxu0 0.0
        %387 = vmatprep.subr.mxu0 0.0
        %388 = vmatpush1.msra.mxu0 0.0
        %389 = vmatprep.subr.mxu0 0.0
        %390 = vmatpush1.msra.mxu0 0.0
        %391 = vmatprep.subr.mxu0 0.0
        %392 = vmatpush1.msra.mxu0 0.0
        %393 = vmatprep.subr.mxu0 0.0
        %394 = vmatpush1.msra.mxu0 0.0
        %395 = vmatprep.subr.mxu0 0.0
        %396 = vmatpush1.msra.mxu0 0.0
        %397 = vmatprep.subr.mxu0 0.0
        %398 = vmatpush1.msra.mxu0 0.0
        %399 = vmatprep.mubr.f32.mxu0 0.0
        %400 = vmatmul.mubr.f32.gmra.mrb[0].mxu0 %v269
        %v401 = vpop.f32.mrb[0].mxu0
        %v402 = vadd.f32 %v323, %v401
        %v403 = vpop.f32.mrb[0].mxu0
        %v404 = vadd.f32 %v327, %v403
        %405 = vdwg.mxu0
        %406 = vmatprep.subr.mxu0 0.0
        %407 = vmatpush1.msra.mxu0 %v272
        %408 = vmatprep.subr.mxu0 0.0
        %409 = vmatpush1.msra.mxu0 %v275
        %410 = vmatprep.subr.mxu0 0.0
        %411 = vmatpush1.msra.mxu0 %v278
        %412 = vmatprep.subr.mxu0 0.0
        %413 = vmatpush1.msra.mxu0 %v281
        %414 = vmatprep.subr.mxu0 0.0
        %415 = vmatpush1.msra.mxu0 %v284
        %416 = vmatprep.subr.mxu0 0.0
        %417 = vmatpush1.msra.mxu0 %v287
        %418 = vmatprep.subr.mxu0 0.0
        %419 = vmatpush1.msra.mxu0 %v290
        %420 = vmatprep.subr.mxu0 0.0
        %421 = vmatpush1.msra.mxu0 %v293
        %422 = vmatprep.subr.mxu0 0.0
        %423 = vmatpush1.msra.mxu0 %v296
        %424 = vmatprep.subr.mxu0 0.0
        %425 = vmatpush1.msra.mxu0 %v299
        %426 = vmatprep.subr.mxu0 0.0
        %427 = vmatpush1.msra.mxu0 %v302
        %428 = vmatprep.subr.mxu0 0.0
        %429 = vmatpush1.msra.mxu0 %v305
        %430 = vmatprep.subr.mxu0 0.0
        %431 = vmatpush1.msra.mxu0 %v308
        %432 = vmatprep.subr.mxu0 0.0
        %433 = vmatpush1.msra.mxu0 %v311
        %434 = vmatprep.subr.mxu0 0.0
        %435 = vmatpush1.msra.mxu0 %v314
        %436 = vmatprep.subr.mxu0 0.0
        %437 = vmatpush1.msra.mxu0 %v317
        %438 = vmatprep.subr.mxu0 0.0
        %439 = vmatpush1.msra.mxu0 0.0
        %440 = vmatprep.subr.mxu0 0.0
        %441 = vmatpush1.msra.mxu0 0.0
        %442 = vmatprep.subr.mxu0 0.0
        %443 = vmatpush1.msra.mxu0 0.0
        %444 = vmatprep.subr.mxu0 0.0
        %445 = vmatpush1.msra.mxu0 0.0
        %446 = vmatprep.subr.mxu0 0.0
        %447 = vmatpush1.msra.mxu0 0.0
        %448 = vmatprep.subr.mxu0 0.0
        %449 = vmatpush1.msra.mxu0 0.0
        %450 = vmatprep.subr.mxu0 0.0
        %451 = vmatpush1.msra.mxu0 0.0
        %452 = vmatprep.subr.mxu0 0.0
        %453 = vmatpush1.msra.mxu0 0.0
        %454 = vmatprep.subr.mxu0 0.0
        %455 = vmatpush1.msra.mxu0 0.0
        %456 = vmatprep.subr.mxu0 0.0
        %457 = vmatpush1.msra.mxu0 0.0
        %458 = vmatprep.subr.mxu0 0.0
        %459 = vmatpush1.msra.mxu0 0.0
        %460 = vmatprep.subr.mxu0 0.0
        %461 = vmatpush1.msra.mxu0 0.0
        %462 = vmatprep.subr.mxu0 0.0
        %463 = vmatpush1.msra.mxu0 0.0
        %464 = vmatprep.subr.mxu0 0.0
        %465 = vmatpush1.msra.mxu0 0.0
        %466 = vmatprep.subr.mxu0 0.0
        %467 = vmatpush1.msra.mxu0 0.0
        %468 = vmatprep.subr.mxu0 0.0
        %469 = vmatpush1.msra.mxu0 0.0
        %470 = vmatprep.mubr.f32.mxu0 0.0
        %471 = vmatmul.mubr.f32.gmra.mrb[0].mxu0 %v269
        %v472 = vpop.f32.mrb[0].mxu0
        %v473 = vadd.f32 %v331, %v472
        %v474 = vpop.f32.mrb[0].mxu0
        %475 = vdwg.mxu0
        %vm476 = vcmask 261120
        %v478 = vsel %vm476, %v402, 0
        %v481 = vsel %vm476, %v404, 0
        %483 = vmatprep.subr.mxu0 0.0
        %484 = vmatpush1.xpose.msra.mxu0 %v481
        %485 = vmatprep.subr.mxu0 0.0
        %486 = vmatpush1.xpose.msra.mxu0 0.0
        %487 = vmatprep.subr.mxu0 0.0
        %488 = vmatpush1.xpose.msra.mxu0 0.0
        %489 = vmatprep.subr.mxu0 0.0
        %490 = vmatpush1.xpose.msra.mxu0 0.0
        %491 = vmatprep.subr.mxu0 0.0
        %492 = vmatpush1.xpose.msra.mxu0 0.0
        %493 = vmatprep.subr.mxu0 0.0
        %494 = vmatpush1.xpose.msra.mxu0 0.0
        %495 = vmatprep.subr.mxu0 0.0
        %496 = vmatpush1.xpose.msra.mxu0 0.0
        %497 = vmatprep.subr.mxu0 0.0
        %498 = vmatpush1.xpose.msra.mxu0 0.0
        %499 = vmatprep.subr.mxu0 0.0
        %500 = vmatpush1.xpose.msra.mxu0 0.0
        %501 = vmatprep.subr.mxu0 0.0
        %502 = vmatpush1.xpose.msra.mxu0 0.0
        %503 = vmatprep.subr.mxu0 0.0
        %504 = vmatpush1.xpose.msra.mxu0 0.0
        %505 = vmatprep.subr.mxu0 0.0
        %506 = vmatpush1.xpose.msra.mxu0 0.0
        %507 = vmatprep.subr.mxu0 0.0
        %508 = vmatpush1.xpose.msra.mxu0 0.0
        %509 = vmatprep.subr.mxu0 0.0
        %510 = vmatpush1.xpose.msra.mxu0 0.0
        %511 = vmatprep.subr.mxu0 0.0
        %512 = vmatpush1.xpose.msra.mxu0 0.0
        %513 = vmatprep.subr.mxu0 0.0
        %514 = vmatpush1.xpose.msra.mxu0 0.0
        %515 = vmatprep.subr.mxu0 0.0
        %516 = vmatpush1.xpose.msra.mxu0 0.0
        %517 = vmatprep.subr.mxu0 0.0
        %518 = vmatpush1.xpose.msra.mxu0 0.0
        %519 = vmatprep.subr.mxu0 0.0
        %520 = vmatpush1.xpose.msra.mxu0 0.0
        %521 = vmatprep.subr.mxu0 0.0
        %522 = vmatpush1.xpose.msra.mxu0 0.0
        %523 = vmatprep.subr.mxu0 0.0
        %524 = vmatpush1.xpose.msra.mxu0 0.0
        %525 = vmatprep.subr.mxu0 0.0
        %526 = vmatpush1.xpose.msra.mxu0 0.0
        %527 = vmatprep.subr.mxu0 0.0
        %528 = vmatpush1.xpose.msra.mxu0 0.0
        %529 = vmatprep.subr.mxu0 0.0
        %530 = vmatpush1.xpose.msra.mxu0 0.0
        %531 = vmatprep.subr.mxu0 0.0
        %532 = vmatpush1.xpose.msra.mxu0 0.0
        %533 = vmatprep.subr.mxu0 0.0
        %534 = vmatpush1.xpose.msra.mxu0 0.0
        %535 = vmatprep.subr.mxu0 0.0
        %536 = vmatpush1.xpose.msra.mxu0 0.0
        %537 = vmatprep.subr.mxu0 0.0
        %538 = vmatpush1.xpose.msra.mxu0 0.0
        %539 = vmatprep.subr.mxu0 0.0
        %540 = vmatpush1.xpose.msra.mxu0 0.0
        %541 = vmatprep.subr.mxu0 0.0
        %542 = vmatpush1.xpose.msra.mxu0 0.0
        %543 = vmatprep.subr.mxu0 0.0
        %544 = vmatpush1.xpose.msra.mxu0 0.0
        %545 = vmatprep.subr.mxu0 0.0
        %546 = vmatpush1.xpose.msra.mxu0 0.0
        %547 = vmatprep.mubr.f32.mxu0 0.0
        %548 = vmatmul.mubr.f32.gmra.mrb[0].mxu0 %v478
        %v549 = vpop.f32.mrb[0].mxu0
        %v550 = vadd.f32 0.0, %v549
        %v551 = vpop.f32.mrb[0].mxu0
        %552 = vdwg.mxu0
        %vm553 = vcmask 64512
        %v554 = vsel %vm553, %v550, -inf
        %555 = vmax.xlane.f32.xlu0 %v554
        %v556 = vpop.xlane.xlu0 %555
        %v557 = vsub.f32 %v550, %v556
        %v558 = vmul.f32 %v557, 1.442695
        %v559 = vpow.pop %v558
        %v560 = vsel %vm553, %v559, 0.0
        %561 = vadd.xlane.f32.xlu0 %v560
        %v562 = vpop.xlane.xlu0 %561
        %v563 = vrcp.pop %v562
        %v564 = vmul.f32 %v559, %v563
        %v566 = vsel %vm553, %v564, 0
        %568 = vmatprep.subr.mxu0 0.0
        %569 = vmatpush1.msra.mxu0 %v473
        %570 = vmatprep.subr.mxu0 0.0
        %571 = vmatpush1.msra.mxu0 0.0
        %572 = vmatprep.subr.mxu0 0.0
        %573 = vmatpush1.msra.mxu0 0.0
        %574 = vmatprep.subr.mxu0 0.0
        %575 = vmatpush1.msra.mxu0 0.0
        %576 = vmatprep.subr.mxu0 0.0
        %577 = vmatpush1.msra.mxu0 0.0
        %578 = vmatprep.subr.mxu0 0.0
        %579 = vmatpush1.msra.mxu0 0.0
        %580 = vmatprep.subr.mxu0 0.0
        %581 = vmatpush1.msra.mxu0 0.0
        %582 = vmatprep.subr.mxu0 0.0
        %583 = vmatpush1.msra.mxu0 0.0
        %584 = vmatprep.subr.mxu0 0.0
        %585 = vmatpush1.msra.mxu0 0.0
        %586 = vmatprep.subr.mxu0 0.0
        %587 = vmatpush1.msra.mxu0 0.0
        %588 = vmatprep.subr.mxu0 0.0
        %589 = vmatpush1.msra.mxu0 0.0
        %590 = vmatprep.subr.mxu0 0.0
        %591 = vmatpush1.msra.mxu0 0.0
        %592 = vmatprep.subr.mxu0 0.0
        %593 = vmatpush1.msra.mxu0 0.0
        %594 = vmatprep.subr.mxu0 0.0
        %595 = vmatpush1.msra.mxu0 0.0
        %596 = vmatprep.subr.mxu0 0.0
        %597 = vmatpush1.msra.mxu0 0.0
        %598 = vmatprep.subr.mxu0 0.0
        %599 = vmatpush1.msra.mxu0 0.0
        %600 = vmatprep.subr.mxu0 0.0
        %601 = vmatpush1.msra.mxu0 0.0
        %602 = vmatprep.subr.mxu0 0.0
        %603 = vmatpush1.msra.mxu0 0.0
        %604 = vmatprep.subr.mxu0 0.0
        %605 = vmatpush1.msra.mxu0 0.0
        %606 = vmatprep.subr.mxu0 0.0
        %607 = vmatpush1.msra.mxu0 0.0
        %608 = vmatprep.subr.mxu0 0.0
        %609 = vmatpush1.msra.mxu0 0.0
        %610 = vmatprep.subr.mxu0 0.0
        %611 = vmatpush1.msra.mxu0 0.0
        %612 = vmatprep.subr.mxu0 0.0
        %613 = vmatpush1.msra.mxu0 0.0
        %614 = vmatprep.subr.mxu0 0.0
        %615 = vmatpush1.msra.mxu0 0.0
        %616 = vmatprep.subr.mxu0 0.0
        %617 = vmatpush1.msra.mxu0 0.0
        %618 = vmatprep.subr.mxu0 0.0
        %619 = vmatpush1.msra.mxu0 0.0
        %620 = vmatprep.subr.mxu0 0.0
        %621 = vmatpush1.msra.mxu0 0.0
        %622 = vmatprep.subr.mxu0 0.0
        %623 = vmatpush1.msra.mxu0 0.0
        %624 = vmatprep.subr.mxu0 0.0
        %625 = vmatpush1.msra.mxu0 0.0
        %626 = vmatprep.subr.mxu0 0.0
        %627 = vmatpush1.msra.mxu0 0.0
        %628 = vmatprep.subr.mxu0 0.0
        %629 = vmatpush1.msra.mxu0 0.0
        %630 = vmatprep.subr.mxu0 0.0
        %631 = vmatpush1.msra.mxu0 0.0
        %632 = vmatprep.mubr.f32.mxu0 0.0
        %633 = vmatmul.mubr.f32.gmra.mrb[0].mxu0 %v566
        %v634 = vpop.f32.mrb[0].mxu0
        %v635 = vadd.f32 0.0, %v634
        %v636 = vpop.f32.mrb[0].mxu0
        %637 = vdwg.mxu0
        %638 = vrot.lane.b32.xlu0 %v402, 96
        %v639 = vpop.permute.xlu0 %638
        %640 = vrot.lane.b32.xlu0 %v404, 96
        %v641 = vpop.permute.xlu0 %640
        %v642 = vsel %vm476, %v639, 0
        %v644 = vsel %vm476, %v641, 0
        %646 = vmatprep.subr.mxu0 0.0
        %647 = vmatpush1.xpose.msra.mxu0 %v644
        %648 = vmatprep.subr.mxu0 0.0
        %649 = vmatpush1.xpose.msra.mxu0 0.0
        %650 = vmatprep.subr.mxu0 0.0
        %651 = vmatpush1.xpose.msra.mxu0 0.0
        %652 = vmatprep.subr.mxu0 0.0
        %653 = vmatpush1.xpose.msra.mxu0 0.0
        %654 = vmatprep.subr.mxu0 0.0
        %655 = vmatpush1.xpose.msra.mxu0 0.0
        %656 = vmatprep.subr.mxu0 0.0
        %657 = vmatpush1.xpose.msra.mxu0 0.0
        %658 = vmatprep.subr.mxu0 0.0
        %659 = vmatpush1.xpose.msra.mxu0 0.0
        %660 = vmatprep.subr.mxu0 0.0
        %661 = vmatpush1.xpose.msra.mxu0 0.0
        %662 = vmatprep.subr.mxu0 0.0
        %663 = vmatpush1.xpose.msra.mxu0 0.0
        %664 = vmatprep.subr.mxu0 0.0
        %665 = vmatpush1.xpose.msra.mxu0 0.0
        %666 = vmatprep.subr.mxu0 0.0
        %667 = vmatpush1.xpose.msra.mxu0 0.0
        %668 = vmatprep.subr.mxu0 0.0
        %669 = vmatpush1.xpose.msra.mxu0 0.0
        %670 = vmatprep.subr.mxu0 0.0
        %671 = vmatpush1.xpose.msra.mxu0 0.0
        %672 = vmatprep.subr.mxu0 0.0
        %673 = vmatpush1.xpose.msra.mxu0 0.0
        %674 = vmatprep.subr.mxu0 0.0
        %675 = vmatpush1.xpose.msra.mxu0 0.0
        %676 = vmatprep.subr.mxu0 0.0
        %677 = vmatpush1.xpose.msra.mxu0 0.0
        %678 = vmatprep.subr.mxu0 0.0
        %679 = vmatpush1.xpose.msra.mxu0 0.0
        %680 = vmatprep.subr.mxu0 0.0
        %681 = vmatpush1.xpose.msra.mxu0 0.0
        %682 = vmatprep.subr.mxu0 0.0
        %683 = vmatpush1.xpose.msra.mxu0 0.0
        %684 = vmatprep.subr.mxu0 0.0
        %685 = vmatpush1.xpose.msra.mxu0 0.0
        %686 = vmatprep.subr.mxu0 0.0
        %687 = vmatpush1.xpose.msra.mxu0 0.0
        %688 = vmatprep.subr.mxu0 0.0
        %689 = vmatpush1.xpose.msra.mxu0 0.0
        %690 = vmatprep.subr.mxu0 0.0
        %691 = vmatpush1.xpose.msra.mxu0 0.0
        %692 = vmatprep.subr.mxu0 0.0
        %693 = vmatpush1.xpose.msra.mxu0 0.0
        %694 = vmatprep.subr.mxu0 0.0
        %695 = vmatpush1.xpose.msra.mxu0 0.0
        %696 = vmatprep.subr.mxu0 0.0
        %697 = vmatpush1.xpose.msra.mxu0 0.0
        %698 = vmatprep.subr.mxu0 0.0
        %699 = vmatpush1.xpose.msra.mxu0 0.0
        %700 = vmatprep.subr.mxu0 0.0
        %701 = vmatpush1.xpose.msra.mxu0 0.0
        %702 = vmatprep.subr.mxu0 0.0
        %703 = vmatpush1.xpose.msra.mxu0 0.0
        %704 = vmatprep.subr.mxu0 0.0
        %705 = vmatpush1.xpose.msra.mxu0 0.0
        %706 = vmatprep.subr.mxu0 0.0
        %707 = vmatpush1.xpose.msra.mxu0 0.0
        %708 = vmatprep.subr.mxu0 0.0
        %709 = vmatpush1.xpose.msra.mxu0 0.0
        %710 = vmatprep.mubr.f32.mxu0 0.0
        %711 = vmatmul.mubr.f32.gmra.mrb[0].mxu0 %v642
        %v712 = vpop.f32.mrb[0].mxu0
        %v713 = vadd.f32 0.0, %v712
        %v714 = vpop.f32.mrb[0].mxu0
        %715 = vdwg.mxu0
        %v716 = vsel %vm553, %v713, -inf
        %717 = vmax.xlane.f32.xlu0 %v716
        %v718 = vpop.xlane.xlu0 %717
        %v719 = vsub.f32 %v713, %v718
        %v720 = vmul.f32 %v719, 1.442695
        %v721 = vpow.pop %v720
        %v722 = vsel %vm553, %v721, 0.0
        %723 = vadd.xlane.f32.xlu0 %v722
        %v724 = vpop.xlane.xlu0 %723
        %v725 = vrcp.pop %v724
        %v726 = vmul.f32 %v721, %v725
        %728 = vrot.lane.b32.xlu0 %v473, 96
        %v729 = vpop.permute.xlu0 %728
        %v732 = vsel %vm553, %v726, 0
        %734 = vmatprep.subr.mxu0 0.0
        %735 = vmatpush1.msra.mxu0 %v729
        %736 = vmatprep.subr.mxu0 0.0
        %737 = vmatpush1.msra.mxu0 0.0
        %738 = vmatprep.subr.mxu0 0.0
        %739 = vmatpush1.msra.mxu0 0.0
        %740 = vmatprep.subr.mxu0 0.0
        %741 = vmatpush1.msra.mxu0 0.0
        %742 = vmatprep.subr.mxu0 0.0
        %743 = vmatpush1.msra.mxu0 0.0
        %744 = vmatprep.subr.mxu0 0.0
        %745 = vmatpush1.msra.mxu0 0.0
        %746 = vmatprep.subr.mxu0 0.0
        %747 = vmatpush1.msra.mxu0 0.0
        %748 = vmatprep.subr.mxu0 0.0
        %749 = vmatpush1.msra.mxu0 0.0
        %750 = vmatprep.subr.mxu0 0.0
        %751 = vmatpush1.msra.mxu0 0.0
        %752 = vmatprep.subr.mxu0 0.0
        %753 = vmatpush1.msra.mxu0 0.0
        %754 = vmatprep.subr.mxu0 0.0
        %755 = vmatpush1.msra.mxu0 0.0
        %756 = vmatprep.subr.mxu0 0.0
        %757 = vmatpush1.msra.mxu0 0.0
        %758 = vmatprep.subr.mxu0 0.0
        %759 = vmatpush1.msra.mxu0 0.0
        %760 = vmatprep.subr.mxu0 0.0
        %761 = vmatpush1.msra.mxu0 0.0
        %762 = vmatprep.subr.mxu0 0.0
        %763 = vmatpush1.msra.mxu0 0.0
        %764 = vmatprep.subr.mxu0 0.0
        %765 = vmatpush1.msra.mxu0 0.0
        %766 = vmatprep.subr.mxu0 0.0
        %767 = vmatpush1.msra.mxu0 0.0
        %768 = vmatprep.subr.mxu0 0.0
        %769 = vmatpush1.msra.mxu0 0.0
        %770 = vmatprep.subr.mxu0 0.0
        %771 = vmatpush1.msra.mxu0 0.0
        %772 = vmatprep.subr.mxu0 0.0
        %773 = vmatpush1.msra.mxu0 0.0
        %774 = vmatprep.subr.mxu0 0.0
        %775 = vmatpush1.msra.mxu0 0.0
        %776 = vmatprep.subr.mxu0 0.0
        %777 = vmatpush1.msra.mxu0 0.0
        %778 = vmatprep.subr.mxu0 0.0
        %779 = vmatpush1.msra.mxu0 0.0
        %780 = vmatprep.subr.mxu0 0.0
        %781 = vmatpush1.msra.mxu0 0.0
        %782 = vmatprep.subr.mxu0 0.0
        %783 = vmatpush1.msra.mxu0 0.0
        %784 = vmatprep.subr.mxu0 0.0
        %785 = vmatpush1.msra.mxu0 0.0
        %786 = vmatprep.subr.mxu0 0.0
        %787 = vmatpush1.msra.mxu0 0.0
        %788 = vmatprep.subr.mxu0 0.0
        %789 = vmatpush1.msra.mxu0 0.0
        %790 = vmatprep.subr.mxu0 0.0
        %791 = vmatpush1.msra.mxu0 0.0
        %792 = vmatprep.subr.mxu0 0.0
        %793 = vmatpush1.msra.mxu0 0.0
        %794 = vmatprep.subr.mxu0 0.0
        %795 = vmatpush1.msra.mxu0 0.0
        %796 = vmatprep.subr.mxu0 0.0
        %797 = vmatpush1.msra.mxu0 0.0
        %798 = vmatprep.mubr.f32.mxu0 0.0
        %799 = vmatmul.mubr.f32.gmra.mrb[0].mxu0 %v732
        %v800 = vpop.f32.mrb[0].mxu0
        %v801 = vadd.f32 0.0, %v800
        %v802 = vpop.f32.mrb[0].mxu0
        %803 = vdwg.mxu0
        %804 = vrot.lane.b32.xlu0 %v402, 64
        %v805 = vpop.permute.xlu0 %804
        %806 = vrot.lane.b32.xlu0 %v404, 64
        %v807 = vpop.permute.xlu0 %806
        %v808 = vsel %vm476, %v805, 0
        %v810 = vsel %vm476, %v807, 0
        %812 = vmatprep.subr.mxu0 0.0
        %813 = vmatpush1.xpose.msra.mxu0 %v810
        %814 = vmatprep.subr.mxu0 0.0
        %815 = vmatpush1.xpose.msra.mxu0 0.0
        %816 = vmatprep.subr.mxu0 0.0
        %817 = vmatpush1.xpose.msra.mxu0 0.0
        %818 = vmatprep.subr.mxu0 0.0
        %819 = vmatpush1.xpose.msra.mxu0 0.0
        %820 = vmatprep.subr.mxu0 0.0
        %821 = vmatpush1.xpose.msra.mxu0 0.0
        %822 = vmatprep.subr.mxu0 0.0
        %823 = vmatpush1.xpose.msra.mxu0 0.0
        %824 = vmatprep.subr.mxu0 0.0
        %825 = vmatpush1.xpose.msra.mxu0 0.0
        %826 = vmatprep.subr.mxu0 0.0
        %827 = vmatpush1.xpose.msra.mxu0 0.0
        %828 = vmatprep.subr.mxu0 0.0
        %829 = vmatpush1.xpose.msra.mxu0 0.0
        %830 = vmatprep.subr.mxu0 0.0
        %831 = vmatpush1.xpose.msra.mxu0 0.0
        %832 = vmatprep.subr.mxu0 0.0
        %833 = vmatpush1.xpose.msra.mxu0 0.0
        %834 = vmatprep.subr.mxu0 0.0
        %835 = vmatpush1.xpose.msra.mxu0 0.0
        %836 = vmatprep.subr.mxu0 0.0
        %837 = vmatpush1.xpose.msra.mxu0 0.0
        %838 = vmatprep.subr.mxu0 0.0
        %839 = vmatpush1.xpose.msra.mxu0 0.0
        %840 = vmatprep.subr.mxu0 0.0
        %841 = vmatpush1.xpose.msra.mxu0 0.0
        %842 = vmatprep.subr.mxu0 0.0
        %843 = vmatpush1.xpose.msra.mxu0 0.0
        %844 = vmatprep.subr.mxu0 0.0
        %845 = vmatpush1.xpose.msra.mxu0 0.0
        %846 = vmatprep.subr.mxu0 0.0
        %847 = vmatpush1.xpose.msra.mxu0 0.0
        %848 = vmatprep.subr.mxu0 0.0
        %849 = vmatpush1.xpose.msra.mxu0 0.0
        %850 = vmatprep.subr.mxu0 0.0
        %851 = vmatpush1.xpose.msra.mxu0 0.0
        %852 = vmatprep.subr.mxu0 0.0
        %853 = vmatpush1.xpose.msra.mxu0 0.0
        %854 = vmatprep.subr.mxu0 0.0
        %855 = vmatpush1.xpose.msra.mxu0 0.0
        %856 = vmatprep.subr.mxu0 0.0
        %857 = vmatpush1.xpose.msra.mxu0 0.0
        %858 = vmatprep.subr.mxu0 0.0
        %859 = vmatpush1.xpose.msra.mxu0 0.0
        %860 = vmatprep.subr.mxu0 0.0
        %861 = vmatpush1.xpose.msra.mxu0 0.0
        %862 = vmatprep.subr.mxu0 0.0
        %863 = vmatpush1.xpose.msra.mxu0 0.0
        %864 = vmatprep.subr.mxu0 0.0
        %865 = vmatpush1.xpose.msra.mxu0 0.0
        %866 = vmatprep.subr.mxu0 0.0
        %867 = vmatpush1.xpose.msra.mxu0 0.0
        %868 = vmatprep.subr.mxu0 0.0
        %869 = vmatpush1.xpose.msra.mxu0 0.0
        %870 = vmatprep.subr.mxu0 0.0
        %871 = vmatpush1.xpose.msra.mxu0 0.0
        %872 = vmatprep.subr.mxu0 0.0
        %873 = vmatpush1.xpose.msra.mxu0 0.0
        %874 = vmatprep.subr.mxu0 0.0
        %875 = vmatpush1.xpose.msra.mxu0 0.0
        %876 = vmatprep.mubr.f32.mxu0 0.0
        %877 = vmatmul.mubr.f32.gmra.mrb[0].mxu0 %v808
        %v878 = vpop.f32.mrb[0].mxu0
        %v879 = vadd.f32 0.0, %v878
        %v880 = vpop.f32.mrb[0].mxu0
        %881 = vdwg.mxu0
        %v882 = vsel %vm553, %v879, -inf
        %883 = vmax.xlane.f32.xlu0 %v882
        %v884 = vpop.xlane.xlu0 %883
        %v885 = vsub.f32 %v879, %v884
        %v886 = vmul.f32 %v885, 1.442695
        %v887 = vpow.pop %v886
        %v888 = vsel %vm553, %v887, 0.0
        %889 = vadd.xlane.f32.xlu0 %v888
        %v890 = vpop.xlane.xlu0 %889
        %v891 = vrcp.pop %v890
        %v892 = vmul.f32 %v887, %v891
        %893 = vrot.lane.b32.xlu0 %v473, 64
        %v894 = vpop.permute.xlu0 %893
        %v897 = vsel %vm553, %v892, 0
        %899 = vmatprep.subr.mxu0 0.0
        %900 = vmatpush1.msra.mxu0 %v894
        %901 = vmatprep.subr.mxu0 0.0
        %902 = vmatpush1.msra.mxu0 0.0
        %903 = vmatprep.subr.mxu0 0.0
        %904 = vmatpush1.msra.mxu0 0.0
        %905 = vmatprep.subr.mxu0 0.0
        %906 = vmatpush1.msra.mxu0 0.0
        %907 = vmatprep.subr.mxu0 0.0
        %908 = vmatpush1.msra.mxu0 0.0
        %909 = vmatprep.subr.mxu0 0.0
        %910 = vmatpush1.msra.mxu0 0.0
        %911 = vmatprep.subr.mxu0 0.0
        %912 = vmatpush1.msra.mxu0 0.0
        %913 = vmatprep.subr.mxu0 0.0
        %914 = vmatpush1.msra.mxu0 0.0
        %915 = vmatprep.subr.mxu0 0.0
        %916 = vmatpush1.msra.mxu0 0.0
        %917 = vmatprep.subr.mxu0 0.0
        %918 = vmatpush1.msra.mxu0 0.0
        %919 = vmatprep.subr.mxu0 0.0
        %920 = vmatpush1.msra.mxu0 0.0
        %921 = vmatprep.subr.mxu0 0.0
        %922 = vmatpush1.msra.mxu0 0.0
        %923 = vmatprep.subr.mxu0 0.0
        %924 = vmatpush1.msra.mxu0 0.0
        %925 = vmatprep.subr.mxu0 0.0
        %926 = vmatpush1.msra.mxu0 0.0
        %927 = vmatprep.subr.mxu0 0.0
        %928 = vmatpush1.msra.mxu0 0.0
        %929 = vmatprep.subr.mxu0 0.0
        %930 = vmatpush1.msra.mxu0 0.0
        %931 = vmatprep.subr.mxu0 0.0
        %932 = vmatpush1.msra.mxu0 0.0
        %933 = vmatprep.subr.mxu0 0.0
        %934 = vmatpush1.msra.mxu0 0.0
        %935 = vmatprep.subr.mxu0 0.0
        %936 = vmatpush1.msra.mxu0 0.0
        %937 = vmatprep.subr.mxu0 0.0
        %938 = vmatpush1.msra.mxu0 0.0
        %939 = vmatprep.subr.mxu0 0.0
        %940 = vmatpush1.msra.mxu0 0.0
        %941 = vmatprep.subr.mxu0 0.0
        %942 = vmatpush1.msra.mxu0 0.0
        %943 = vmatprep.subr.mxu0 0.0
        %944 = vmatpush1.msra.mxu0 0.0
        %945 = vmatprep.subr.mxu0 0.0
        %946 = vmatpush1.msra.mxu0 0.0
        %947 = vmatprep.subr.mxu0 0.0
        %948 = vmatpush1.msra.mxu0 0.0
        %949 = vmatprep.subr.mxu0 0.0
        %950 = vmatpush1.msra.mxu0 0.0
        %951 = vmatprep.subr.mxu0 0.0
        %952 = vmatpush1.msra.mxu0 0.0
        %953 = vmatprep.subr.mxu0 0.0
        %954 = vmatpush1.msra.mxu0 0.0
        %955 = vmatprep.subr.mxu0 0.0
        %956 = vmatpush1.msra.mxu0 0.0
        %957 = vmatprep.subr.mxu0 0.0
        %958 = vmatpush1.msra.mxu0 0.0
        %959 = vmatprep.subr.mxu0 0.0
        %960 = vmatpush1.msra.mxu0 0.0
        %961 = vmatprep.subr.mxu0 0.0
        %962 = vmatpush1.msra.mxu0 0.0
        %963 = vmatprep.mubr.f32.mxu0 0.0
        %964 = vmatmul.mubr.f32.gmra.mrb[0].mxu0 %v897
        %v965 = vpop.f32.mrb[0].mxu0
        %v966 = vadd.f32 0.0, %v965
        %v967 = vpop.f32.mrb[0].mxu0
        %968 = vdwg.mxu0
        %969 = vrot.lane.b32.xlu0 %v402, 32
        %v970 = vpop.permute.xlu0 %969
        %971 = vrot.lane.b32.xlu0 %v404, 32
        %v972 = vpop.permute.xlu0 %971
        %v973 = vsel %vm476, %v970, 0
        %v975 = vsel %vm476, %v972, 0
        %977 = vmatprep.subr.mxu0 0.0
        %978 = vmatpush1.xpose.msra.mxu0 %v975
        %979 = vmatprep.subr.mxu0 0.0
        %980 = vmatpush1.xpose.msra.mxu0 0.0
        %981 = vmatprep.subr.mxu0 0.0
        %982 = vmatpush1.xpose.msra.mxu0 0.0
        %983 = vmatprep.subr.mxu0 0.0
        %984 = vmatpush1.xpose.msra.mxu0 0.0
        %985 = vmatprep.subr.mxu0 0.0
        %986 = vmatpush1.xpose.msra.mxu0 0.0
        %987 = vmatprep.subr.mxu0 0.0
        %988 = vmatpush1.xpose.msra.mxu0 0.0
        %989 = vmatprep.subr.mxu0 0.0
        %990 = vmatpush1.xpose.msra.mxu0 0.0
        %991 = vmatprep.subr.mxu0 0.0
        %992 = vmatpush1.xpose.msra.mxu0 0.0
        %993 = vmatprep.subr.mxu0 0.0
        %994 = vmatpush1.xpose.msra.mxu0 0.0
        %995 = vmatprep.subr.mxu0 0.0
        %996 = vmatpush1.xpose.msra.mxu0 0.0
        %997 = vmatprep.subr.mxu0 0.0
        %998 = vmatpush1.xpose.msra.mxu0 0.0
        %999 = vmatprep.subr.mxu0 0.0
        %1000 = vmatpush1.xpose.msra.mxu0 0.0
        %1001 = vmatprep.subr.mxu0 0.0
        %1002 = vmatpush1.xpose.msra.mxu0 0.0
        %1003 = vmatprep.subr.mxu0 0.0
        %1004 = vmatpush1.xpose.msra.mxu0 0.0
        %1005 = vmatprep.subr.mxu0 0.0
        %1006 = vmatpush1.xpose.msra.mxu0 0.0
        %1007 = vmatprep.subr.mxu0 0.0
        %1008 = vmatpush1.xpose.msra.mxu0 0.0
        %1009 = vmatprep.subr.mxu0 0.0
        %1010 = vmatpush1.xpose.msra.mxu0 0.0
        %1011 = vmatprep.subr.mxu0 0.0
        %1012 = vmatpush1.xpose.msra.mxu0 0.0
        %1013 = vmatprep.subr.mxu0 0.0
        %1014 = vmatpush1.xpose.msra.mxu0 0.0
        %1015 = vmatprep.subr.mxu0 0.0
        %1016 = vmatpush1.xpose.msra.mxu0 0.0
        %1017 = vmatprep.subr.mxu0 0.0
        %1018 = vmatpush1.xpose.msra.mxu0 0.0
        %1019 = vmatprep.subr.mxu0 0.0
        %1020 = vmatpush1.xpose.msra.mxu0 0.0
        %1021 = vmatprep.subr.mxu0 0.0
        %1022 = vmatpush1.xpose.msra.mxu0 0.0
        %1023 = vmatprep.subr.mxu0 0.0
        %1024 = vmatpush1.xpose.msra.mxu0 0.0
        %1025 = vmatprep.subr.mxu0 0.0
        %1026 = vmatpush1.xpose.msra.mxu0 0.0
        %1027 = vmatprep.subr.mxu0 0.0
        %1028 = vmatpush1.xpose.msra.mxu0 0.0
        %1029 = vmatprep.subr.mxu0 0.0
        %1030 = vmatpush1.xpose.msra.mxu0 0.0
        %1031 = vmatprep.subr.mxu0 0.0
        %1032 = vmatpush1.xpose.msra.mxu0 0.0
        %1033 = vmatprep.subr.mxu0 0.0
        %1034 = vmatpush1.xpose.msra.mxu0 0.0
        %1035 = vmatprep.subr.mxu0 0.0
        %1036 = vmatpush1.xpose.msra.mxu0 0.0
        %1037 = vmatprep.subr.mxu0 0.0
        %1038 = vmatpush1.xpose.msra.mxu0 0.0
        %1039 = vmatprep.subr.mxu0 0.0
        %1040 = vmatpush1.xpose.msra.mxu0 0.0
        %1041 = vmatprep.mubr.f32.mxu0 0.0
        %1042 = vmatmul.mubr.f32.gmra.mrb[0].mxu0 %v973
        %v1043 = vpop.f32.mrb[0].mxu0
        %v1044 = vadd.f32 0.0, %v1043
        %v1045 = vpop.f32.mrb[0].mxu0
        %1046 = vdwg.mxu0
        %v1047 = vsel %vm553, %v1044, -inf
        %1048 = vmax.xlane.f32.xlu0 %v1047
        %v1049 = vpop.xlane.xlu0 %1048
        %v1050 = vsub.f32 %v1044, %v1049
        %v1051 = vmul.f32 %v1050, 1.442695
        %v1052 = vpow.pop %v1051
        %v1053 = vsel %vm553, %v1052, 0.0
        %1054 = vadd.xlane.f32.xlu0 %v1053
        %v1055 = vpop.xlane.xlu0 %1054
        %v1056 = vrcp.pop %v1055
        %v1057 = vmul.f32 %v1052, %v1056
        %1058 = vrot.lane.b32.xlu0 %v473, 32
        %v1059 = vpop.permute.xlu0 %1058
        %v1062 = vsel %vm553, %v1057, 0
        %1064 = vmatprep.subr.mxu0 0.0
        %1065 = vmatpush1.msra.mxu0 %v1059
        %1066 = vmatprep.subr.mxu0 0.0
        %1067 = vmatpush1.msra.mxu0 0.0
        %1068 = vmatprep.subr.mxu0 0.0
        %1069 = vmatpush1.msra.mxu0 0.0
        %1070 = vmatprep.subr.mxu0 0.0
        %1071 = vmatpush1.msra.mxu0 0.0
        %1072 = vmatprep.subr.mxu0 0.0
        %1073 = vmatpush1.msra.mxu0 0.0
        %1074 = vmatprep.subr.mxu0 0.0
        %1075 = vmatpush1.msra.mxu0 0.0
        %1076 = vmatprep.subr.mxu0 0.0
        %1077 = vmatpush1.msra.mxu0 0.0
        %1078 = vmatprep.subr.mxu0 0.0
        %1079 = vmatpush1.msra.mxu0 0.0
        %1080 = vmatprep.subr.mxu0 0.0
        %1081 = vmatpush1.msra.mxu0 0.0
        %1082 = vmatprep.subr.mxu0 0.0
        %1083 = vmatpush1.msra.mxu0 0.0
        %1084 = vmatprep.subr.mxu0 0.0
        %1085 = vmatpush1.msra.mxu0 0.0
        %1086 = vmatprep.subr.mxu0 0.0
        %1087 = vmatpush1.msra.mxu0 0.0
        %1088 = vmatprep.subr.mxu0 0.0
        %1089 = vmatpush1.msra.mxu0 0.0
        %1090 = vmatprep.subr.mxu0 0.0
        %1091 = vmatpush1.msra.mxu0 0.0
        %1092 = vmatprep.subr.mxu0 0.0
        %1093 = vmatpush1.msra.mxu0 0.0
        %1094 = vmatprep.subr.mxu0 0.0
        %1095 = vmatpush1.msra.mxu0 0.0
        %1096 = vmatprep.subr.mxu0 0.0
        %1097 = vmatpush1.msra.mxu0 0.0
        %1098 = vmatprep.subr.mxu0 0.0
        %1099 = vmatpush1.msra.mxu0 0.0
        %1100 = vmatprep.subr.mxu0 0.0
        %1101 = vmatpush1.msra.mxu0 0.0
        %1102 = vmatprep.subr.mxu0 0.0
        %1103 = vmatpush1.msra.mxu0 0.0
        %1104 = vmatprep.subr.mxu0 0.0
        %1105 = vmatpush1.msra.mxu0 0.0
        %1106 = vmatprep.subr.mxu0 0.0
        %1107 = vmatpush1.msra.mxu0 0.0
        %1108 = vmatprep.subr.mxu0 0.0
        %1109 = vmatpush1.msra.mxu0 0.0
        %1110 = vmatprep.subr.mxu0 0.0
        %1111 = vmatpush1.msra.mxu0 0.0
        %1112 = vmatprep.subr.mxu0 0.0
        %1113 = vmatpush1.msra.mxu0 0.0
        %1114 = vmatprep.subr.mxu0 0.0
        %1115 = vmatpush1.msra.mxu0 0.0
        %1116 = vmatprep.subr.mxu0 0.0
        %1117 = vmatpush1.msra.mxu0 0.0
        %1118 = vmatprep.subr.mxu0 0.0
        %1119 = vmatpush1.msra.mxu0 0.0
        %1120 = vmatprep.subr.mxu0 0.0
        %1121 = vmatpush1.msra.mxu0 0.0
        %1122 = vmatprep.subr.mxu0 0.0
        %1123 = vmatpush1.msra.mxu0 0.0
        %1124 = vmatprep.subr.mxu0 0.0
        %1125 = vmatpush1.msra.mxu0 0.0
        %1126 = vmatprep.subr.mxu0 0.0
        %1127 = vmatpush1.msra.mxu0 0.0
        %1128 = vmatprep.mubr.f32.mxu0 0.0
        %1129 = vmatmul.mubr.f32.gmra.mrb[0].mxu0 %v1062
        %v1130 = vpop.f32.mrb[0].mxu0
        %v1131 = vadd.f32 0.0, %v1130
        %v1132 = vpop.f32.mrb[0].mxu0
        %1133 = vdwg.mxu0
        %1135 = vrot.lane.b32.xlu0 %v801, 32
        %v1136 = vpop.permute.xlu0 %1135
        %1139 = vrot.lane.b32.xlu0 %v966, 64
        %v1140 = vpop.permute.xlu0 %1139
        %1143 = vrot.lane.b32.xlu0 %v1131, 96
        %v1144 = vpop.permute.xlu0 %1143
        %v1146 = vsel %vm476, %v635, %v1136
        %vm1147 = vcmask 523264
        %v1148 = vsel %vm1147, %v1146, %v1140
        %vm1149 = vcmask 785408
        %v1150 = vsel %vm1149, %v1148, %v1144
        %v1151 = vld [vmem:[#allocation7] sm:$0xff]
        %v1152 = vld [vmem:[#allocation7 + $0x8] sm:$0xff]
        %v1153 = vld [vmem:[#allocation7 + $0x10] sm:$0xff]
        %v1154 = vld [vmem:[#allocation7 + $0x18] sm:$0xff]
        %v1155 = vld [vmem:[#allocation7 + $0x20] sm:$0xff]
        %v1156 = vld [vmem:[#allocation7 + $0x28] sm:$0xff]
        %v1157 = vld [vmem:[#allocation7 + $0x30] sm:$0xff]
        %v1158 = vld [vmem:[#allocation7 + $0x38] sm:$0xff]
        %v1159 = vld [vmem:[#allocation7 + $0x40] sm:$0xff]
        %v1160 = vld [vmem:[#allocation7 + $0x48] sm:$0xff]
        %v1161 = vld [vmem:[#allocation7 + $0x50] sm:$0xff]
        %v1162 = vld [vmem:[#allocation7 + $0x58] sm:$0xff]
        %v1163 = vld [vmem:[#allocation7 + $0x60] sm:$0xff]
        %v1164 = vld [vmem:[#allocation7 + $0x68] sm:$0xff]
        %v1165 = vld [vmem:[#allocation7 + $0x70] sm:$0xff]
        %v1166 = vld [vmem:[#allocation7 + $0x78] sm:$0xff]
        %v1167 = vld [vmem:[%s4] sm:$0x1]
        %v1169 = vlaneseq
        %v1170 = vshrl.u32 %v1169, 7
        %v1171 = vsub.s32 0, %v1170
        %v1172 = vrot.slane %v1167, %v1171
        %1174 = vmatprep.subr.mxu0 0.0
        %1175 = vmatpush1.msra.mxu0 %v1151
        %1176 = vmatprep.subr.mxu0 0.0
        %1177 = vmatpush1.msra.mxu0 %v1152
        %1178 = vmatprep.subr.mxu0 0.0
        %1179 = vmatpush1.msra.mxu0 %v1153
        %1180 = vmatprep.subr.mxu0 0.0
        %1181 = vmatpush1.msra.mxu0 %v1154
        %1182 = vmatprep.subr.mxu0 0.0
        %1183 = vmatpush1.msra.mxu0 %v1155
        %1184 = vmatprep.subr.mxu0 0.0
        %1185 = vmatpush1.msra.mxu0 %v1156
        %1186 = vmatprep.subr.mxu0 0.0
        %1187 = vmatpush1.msra.mxu0 %v1157
        %1188 = vmatprep.subr.mxu0 0.0
        %1189 = vmatpush1.msra.mxu0 %v1158
        %1190 = vmatprep.subr.mxu0 0.0
        %1191 = vmatpush1.msra.mxu0 %v1159
        %1192 = vmatprep.subr.mxu0 0.0
        %1193 = vmatpush1.msra.mxu0 %v1160
        %1194 = vmatprep.subr.mxu0 0.0
        %1195 = vmatpush1.msra.mxu0 %v1161
        %1196 = vmatprep.subr.mxu0 0.0
        %1197 = vmatpush1.msra.mxu0 %v1162
        %1198 = vmatprep.subr.mxu0 0.0
        %1199 = vmatpush1.msra.mxu0 %v1163
        %1200 = vmatprep.subr.mxu0 0.0
        %1201 = vmatpush1.msra.mxu0 %v1164
        %1202 = vmatprep.subr.mxu0 0.0
        %1203 = vmatpush1.msra.mxu0 %v1165
        %1204 = vmatprep.subr.mxu0 0.0
        %1205 = vmatpush1.msra.mxu0 %v1166
        %1206 = vmatprep.subr.mxu0 0.0
        %1207 = vmatpush1.msra.mxu0 0.0
        %1208 = vmatprep.subr.mxu0 0.0
        %1209 = vmatpush1.msra.mxu0 0.0
        %1210 = vmatprep.subr.mxu0 0.0
        %1211 = vmatpush1.msra.mxu0 0.0
        %1212 = vmatprep.subr.mxu0 0.0
        %1213 = vmatpush1.msra.mxu0 0.0
        %1214 = vmatprep.subr.mxu0 0.0
        %1215 = vmatpush1.msra.mxu0 0.0
        %1216 = vmatprep.subr.mxu0 0.0
        %1217 = vmatpush1.msra.mxu0 0.0
        %1218 = vmatprep.subr.mxu0 0.0
        %1219 = vmatpush1.msra.mxu0 0.0
        %1220 = vmatprep.subr.mxu0 0.0
        %1221 = vmatpush1.msra.mxu0 0.0
        %1222 = vmatprep.subr.mxu0 0.0
        %1223 = vmatpush1.msra.mxu0 0.0
        %1224 = vmatprep.subr.mxu0 0.0
        %1225 = vmatpush1.msra.mxu0 0.0
        %1226 = vmatprep.subr.mxu0 0.0
        %1227 = vmatpush1.msra.mxu0 0.0
        %1228 = vmatprep.subr.mxu0 0.0
        %1229 = vmatpush1.msra.mxu0 0.0
        %1230 = vmatprep.subr.mxu0 0.0
        %1231 = vmatpush1.msra.mxu0 0.0
        %1232 = vmatprep.subr.mxu0 0.0
        %1233 = vmatpush1.msra.mxu0 0.0
        %1234 = vmatprep.subr.mxu0 0.0
        %1235 = vmatpush1.msra.mxu0 0.0
        %1236 = vmatprep.subr.mxu0 0.0
        %1237 = vmatpush1.msra.mxu0 0.0
        %1238 = vmatprep.mubr.f32.mxu0 0.0
        %1239 = vmatmul.mubr.f32.gmra.mrb[0].mxu0 %v1150
        %v1240 = vpop.f32.mrb[0].mxu0
        %v1241 = vadd.f32 %v1172, %v1240
        %v1242 = vpop.f32.mrb[0].mxu0
        %1243 = vdwg.mxu0
        %1244 = vst [vmem:[%s268] sm:$0xff] %v1241
        %s1245 = sand.u32 %s141, 1
        %s1246 = scalar_lea.sflag [#allocation4], %s1245
        %s1247 = sand.u32 %s141, 1
        %s1248 = smul.addr %s1247, 8
        %s1249 = scalar_lea.vmem [#allocation8], %s1248
        // Predicated region
        $region53: #{tpu_custom_call.1} parent=39 // pred_check
          %p1250 = pneg %p151
        $region54: #{tpu_custom_call.1} parent=39 // pred_check_branch
          %1252 = sbr.rel (%p1250) target = $region56
        $region55: #{tpu_custom_call.1} parent=39 // pred_region
          %s1254 = ssub.s32 128, 128
          %1255 = vsyncadd %s1246, %s1254
          %s1256 = smul.addr %s23, 128
          %s1257 = scalar_lea.hbm %s5, %s1256
          %s1259 = sshll.u32 %s1249, 4
          %s1260 = int_to_ptr.vmem [resolvable:$true] %s1259
          %1262 = dma.vmem_to_hbm [thread:$0]  %s1260, 128, %s1257, %s1246
        $region56: #{tpu_custom_call.1} parent=39 // pred_fallthru
          _
      $region40: #{tpu_custom_call.1} parent=5 // pred_fallthru
        _
      %p1263 = scmp.le.s32.totalorder 2, %s18
      // Predicated region
      $region57: #{tpu_custom_call.1} parent=5 // pred_check
        %p1264 = pneg %p1263
      $region58: #{tpu_custom_call.1} parent=5 // pred_check_branch
        %1266 = sbr.rel (%p1264) target = $region60
      $region59: #{tpu_custom_call.1} parent=5 // pred_region
        %s1267 = ssub.s32 %s18, 2
        // Predicated region
        $region61: #{tpu_custom_call.1} parent=59 // pred_check
          %p1268 = pneg %p157
        $region62: #{tpu_custom_call.1} parent=59 // pred_check_branch
          %1270 = sbr.rel (%p1268) target = $region64
        $region63: #{tpu_custom_call.1} parent=59 // pred_region
          %s1271 = sand.u32 %s142, 1
          %s1272 = scalar_lea.sflag [#allocation4], %s1271
          %s1273 = sand.u32 %s142, 1
          %s1274 = smul.addr %s1273, 8
          %s1275 = scalar_lea.vmem [#allocation8], %s1274
          %1276 = dma.done %s1272, 128
        $region64: #{tpu_custom_call.1} parent=59 // pred_fallthru
          _
      $region60: #{tpu_custom_call.1} parent=5 // pred_fallthru
        _
    $region6: #{tpu_custom_call.1} parent=1 // loop_footer
      %s22 = sadd.s32 1, %s18
    $region7: #{tpu_custom_call.1} parent=1 // loop_footer_branch
      %17 = sbr.rel target = $region3
    $region8: #{tpu_custom_call.1} parent=1 // loop_exit
      _
    %1277 = vsyncpa [#allocation3], 1
    %s1278 = scalar_lea.sflag [#allocation3], 1
    %1279 = vsyncpa %s1278, 1
    %1280 = vsyncpa [#allocation6], 1
    %1281 = vsyncpa [#allocation4], 1
    %s1282 = scalar_lea.sflag [#allocation4], 1
    %1283 = vsyncpa %s1282, 1

</llo_original>
